<compile_context>
chip_gen: v5e
topology: v5e:2x2
jax: 0.10.0
libtpu: 0.0.40
codegen_flags: <defaults>
</compile_context>

<pallas_src>
import functools

import jax
import jax.numpy as jnp
from jax.experimental import pallas as pl
from jax.experimental.pallas import tpu as pltpu


def _round_up(x: int, m: int) -> int:
    return (x + m - 1) // m * m


def _embedding_kernel(idx_ref, w_hbm, o_ref, sem, *, tb):
    """Gather `tb` embedding rows from the HBM table directly into o_ref.

    idx_ref : SMEM (N_pad,) int32   -- scalar-prefetched token ids
    w_hbm   : HBM  (V, D)           -- embedding table, raw ref (pl.ANY)
    o_ref   : VMEM (tb, D)          -- pipelined output tile for this step
    sem     : DMA semaphore (shared by all row copies of this tile)
    """
    base = pl.program_id(0) * tb

    # Issue every row-gather DMA for this tile up front so they all overlap.
    for r in range(tb):                       # static unroll (tb is modest)
        row = idx_ref[base + r]               # dynamic token id from SMEM
        pltpu.make_async_copy(
            w_hbm.at[pl.ds(row, 1)],          # (1, D) row of the HBM table
            o_ref.at[pl.ds(r, 1)],            # (1, D) slot of the output tile
            sem,
        ).start()

    # Drain: one wait per issued copy (all copies have identical byte size).
    for r in range(tb):
        pltpu.make_async_copy(
            w_hbm.at[pl.ds(0, 1)], o_ref.at[pl.ds(r, 1)], sem
        ).wait()


def embedding_lookup(weight, idx, *, block_tokens: int = 64):
    """weight: (V, D) float table, idx: integer array of any shape.
    Returns weight[idx] with shape idx.shape + (D,), same dtype as weight."""
    V, D = weight.shape
    orig_shape = idx.shape

    # torch asserts int64 ids; JAX default config has no x64, int32 suffices.
    flat = idx.reshape(-1).astype(jnp.int32)
    flat = jnp.clip(flat, 0, V - 1)           # guard against OOB DMA
    n = flat.shape[0]

    block_tokens = max(8, _round_up(int(block_tokens), 8))
    tb = min(block_tokens, _round_up(n, 8))   # multiple of 8 -> legal block dim
    n_pad = _round_up(n, tb)
    if n_pad != n:
        flat = jnp.pad(flat, (0, n_pad - n))  # padded tokens gather row 0, sliced off

    kernel = functools.partial(_embedding_kernel, tb=tb)

    out = pl.pallas_call(
        kernel,
        out_shape=jax.ShapeDtypeStruct((n_pad, D), weight.dtype),
        grid_spec=pltpu.PrefetchScalarGridSpec(
            num_scalar_prefetch=1,            # token ids -> SMEM
            grid=(n_pad // tb,),
            in_specs=[
                pl.BlockSpec(memory_space=pl.ANY),     # weight stays in HBM
            ],
            out_specs=pl.BlockSpec((tb, D), lambda i, idx_ref: (i, 0)),
            scratch_shapes=[
                pltpu.SemaphoreType.DMA(()),           # one sem, waited per copy
            ],
        ),
        compiler_params=pltpu.CompilerParams(
            dimension_semantics=("parallel",),          # independent tiles -> megacore
        ),
    )(flat, weight)

    return out[:n].reshape(*orig_shape, D)


if __name__ == "__main__":
    key = jax.random.PRNGKey(0)
    kw, ki = jax.random.split(key)

    num_embeddings, embedding_dim = 64, 32
    batch, seq = 2, 8

    weight = jax.random.normal(kw, (num_embeddings, embedding_dim), dtype=jnp.float32)
    # TODO(synk): torch's forward asserts int64 ids; JAX default backend runs
    # with x64 disabled, so int32 ids are used (lookup semantics identical).
    idx = jax.random.randint(ki, (batch, seq), 0, num_embeddings, dtype=jnp.int32)

    out = embedding_lookup(weight, idx, block_tokens=64)
    out = jax.block_until_ready(out)

    ref = jnp.take(weight, idx, axis=0)
    assert out.shape == (batch, seq, embedding_dim), out.shape
    assert jnp.array_equal(out, ref), (out, ref)

    print("KERNEL_OK")
</pallas_src>

<mosaic_0001>
module attributes {stable_mosaic.version = 11 : i64} {
  func.func @_embedding_kernel(%arg0: i32, %arg1: memref<16xi32, #tpu.memory_space<smem>>, %arg2: memref<64x32xf32, #tpu.memory_space<any>>, %arg3: memref<16x32xf32, #tpu.memory_space<vmem>>, %arg4: memref<!tpu.dma_semaphore, #tpu.memory_space<semaphore_mem>>) attributes {dimension_semantics = [#tpu.dimension_semantics<parallel>], iteration_bounds = array<i64: 1>, scalar_prefetch = 1 : i64, scratch_operands = 1 : i64, tpu.core_type = #tpu.core_type<tc>, window_params = [{}, {transform_indices = @transform_1, window_bounds = array<i64: 16, 32>}]} {
    %c16_i32 = arith.constant 16 : i32
    %0 = arith.muli %arg0, %c16_i32 : i32
    %c0_i32 = arith.constant 0 : i32
    %1 = arith.addi %0, %c0_i32 : i32
    %2 = arith.index_cast %1 : i32 to index
    %3 = memref.load %arg1[%2] : memref<16xi32, #tpu.memory_space<smem>>
    %c0_i32_0 = arith.constant 0 : i32
    %4 = tpu.memref_slice %arg2[%3, %c0_i32_0] : memref<64x32xf32, #tpu.memory_space<any>> -> memref<1x32xf32, #tpu.memory_space<any>>
    %c0_i32_1 = arith.constant 0 : i32
    %c0_i32_2 = arith.constant 0 : i32
    %5 = tpu.memref_slice %arg3[%c0_i32_1, %c0_i32_2] : memref<16x32xf32, #tpu.memory_space<vmem>> -> memref<1x32xf32, #tpu.memory_space<vmem>>
    tpu.enqueue_dma source(%4 : memref<1x32xf32, #tpu.memory_space<any>>) target(%5 : memref<1x32xf32, #tpu.memory_space<vmem>>) target_semaphore(%arg4 : memref<!tpu.dma_semaphore, #tpu.memory_space<semaphore_mem>>)
    %c1_i32 = arith.constant 1 : i32
    %6 = arith.addi %0, %c1_i32 : i32
    %7 = arith.index_cast %6 : i32 to index
    %8 = memref.load %arg1[%7] : memref<16xi32, #tpu.memory_space<smem>>
    %c0_i32_3 = arith.constant 0 : i32
    %9 = tpu.memref_slice %arg2[%8, %c0_i32_3] : memref<64x32xf32, #tpu.memory_space<any>> -> memref<1x32xf32, #tpu.memory_space<any>>
    %c1_i32_4 = arith.constant 1 : i32
    %c0_i32_5 = arith.constant 0 : i32
    %10 = tpu.memref_slice %arg3[%c1_i32_4, %c0_i32_5] : memref<16x32xf32, #tpu.memory_space<vmem>> -> memref<1x32xf32, #tpu.memory_space<vmem>>
    tpu.enqueue_dma source(%9 : memref<1x32xf32, #tpu.memory_space<any>>) target(%10 : memref<1x32xf32, #tpu.memory_space<vmem>>) target_semaphore(%arg4 : memref<!tpu.dma_semaphore, #tpu.memory_space<semaphore_mem>>)
    %c2_i32 = arith.constant 2 : i32
    %11 = arith.addi %0, %c2_i32 : i32
    %12 = arith.index_cast %11 : i32 to index
    %13 = memref.load %arg1[%12] : memref<16xi32, #tpu.memory_space<smem>>
    %c0_i32_6 = arith.constant 0 : i32
    %14 = tpu.memref_slice %arg2[%13, %c0_i32_6] : memref<64x32xf32, #tpu.memory_space<any>> -> memref<1x32xf32, #tpu.memory_space<any>>
    %c2_i32_7 = arith.constant 2 : i32
    %c0_i32_8 = arith.constant 0 : i32
    %15 = tpu.memref_slice %arg3[%c2_i32_7, %c0_i32_8] : memref<16x32xf32, #tpu.memory_space<vmem>> -> memref<1x32xf32, #tpu.memory_space<vmem>>
    tpu.enqueue_dma source(%14 : memref<1x32xf32, #tpu.memory_space<any>>) target(%15 : memref<1x32xf32, #tpu.memory_space<vmem>>) target_semaphore(%arg4 : memref<!tpu.dma_semaphore, #tpu.memory_space<semaphore_mem>>)
    %c3_i32 = arith.constant 3 : i32
    %16 = arith.addi %0, %c3_i32 : i32
    %17 = arith.index_cast %16 : i32 to index
    %18 = memref.load %arg1[%17] : memref<16xi32, #tpu.memory_space<smem>>
    %c0_i32_9 = arith.constant 0 : i32
    %19 = tpu.memref_slice %arg2[%18, %c0_i32_9] : memref<64x32xf32, #tpu.memory_space<any>> -> memref<1x32xf32, #tpu.memory_space<any>>
    %c3_i32_10 = arith.constant 3 : i32
    %c0_i32_11 = arith.constant 0 : i32
    %20 = tpu.memref_slice %arg3[%c3_i32_10, %c0_i32_11] : memref<16x32xf32, #tpu.memory_space<vmem>> -> memref<1x32xf32, #tpu.memory_space<vmem>>
    tpu.enqueue_dma source(%19 : memref<1x32xf32, #tpu.memory_space<any>>) target(%20 : memref<1x32xf32, #tpu.memory_space<vmem>>) target_semaphore(%arg4 : memref<!tpu.dma_semaphore, #tpu.memory_space<semaphore_mem>>)
    %c4_i32 = arith.constant 4 : i32
    %21 = arith.addi %0, %c4_i32 : i32
    %22 = arith.index_cast %21 : i32 to index
    %23 = memref.load %arg1[%22] : memref<16xi32, #tpu.memory_space<smem>>
    %c0_i32_12 = arith.constant 0 : i32
    %24 = tpu.memref_slice %arg2[%23, %c0_i32_12] : memref<64x32xf32, #tpu.memory_space<any>> -> memref<1x32xf32, #tpu.memory_space<any>>
    %c4_i32_13 = arith.constant 4 : i32
    %c0_i32_14 = arith.constant 0 : i32
    %25 = tpu.memref_slice %arg3[%c4_i32_13, %c0_i32_14] : memref<16x32xf32, #tpu.memory_space<vmem>> -> memref<1x32xf32, #tpu.memory_space<vmem>>
    tpu.enqueue_dma source(%24 : memref<1x32xf32, #tpu.memory_space<any>>) target(%25 : memref<1x32xf32, #tpu.memory_space<vmem>>) target_semaphore(%arg4 : memref<!tpu.dma_semaphore, #tpu.memory_space<semaphore_mem>>)
    %c5_i32 = arith.constant 5 : i32
    %26 = arith.addi %0, %c5_i32 : i32
    %27 = arith.index_cast %26 : i32 to index
    %28 = memref.load %arg1[%27] : memref<16xi32, #tpu.memory_space<smem>>
    %c0_i32_15 = arith.constant 0 : i32
    %29 = tpu.memref_slice %arg2[%28, %c0_i32_15] : memref<64x32xf32, #tpu.memory_space<any>> -> memref<1x32xf32, #tpu.memory_space<any>>
    %c5_i32_16 = arith.constant 5 : i32
    %c0_i32_17 = arith.constant 0 : i32
    %30 = tpu.memref_slice %arg3[%c5_i32_16, %c0_i32_17] : memref<16x32xf32, #tpu.memory_space<vmem>> -> memref<1x32xf32, #tpu.memory_space<vmem>>
    tpu.enqueue_dma source(%29 : memref<1x32xf32, #tpu.memory_space<any>>) target(%30 : memref<1x32xf32, #tpu.memory_space<vmem>>) target_semaphore(%arg4 : memref<!tpu.dma_semaphore, #tpu.memory_space<semaphore_mem>>)
    %c6_i32 = arith.constant 6 : i32
    %31 = arith.addi %0, %c6_i32 : i32
    %32 = arith.index_cast %31 : i32 to index
    %33 = memref.load %arg1[%32] : memref<16xi32, #tpu.memory_space<smem>>
    %c0_i32_18 = arith.constant 0 : i32
    %34 = tpu.memref_slice %arg2[%33, %c0_i32_18] : memref<64x32xf32, #tpu.memory_space<any>> -> memref<1x32xf32, #tpu.memory_space<any>>
    %c6_i32_19 = arith.constant 6 : i32
    %c0_i32_20 = arith.constant 0 : i32
    %35 = tpu.memref_slice %arg3[%c6_i32_19, %c0_i32_20] : memref<16x32xf32, #tpu.memory_space<vmem>> -> memref<1x32xf32, #tpu.memory_space<vmem>>
    tpu.enqueue_dma source(%34 : memref<1x32xf32, #tpu.memory_space<any>>) target(%35 : memref<1x32xf32, #tpu.memory_space<vmem>>) target_semaphore(%arg4 : memref<!tpu.dma_semaphore, #tpu.memory_space<semaphore_mem>>)
    %c7_i32 = arith.constant 7 : i32
    %36 = arith.addi %0, %c7_i32 : i32
    %37 = arith.index_cast %36 : i32 to index
    %38 = memref.load %arg1[%37] : memref<16xi32, #tpu.memory_space<smem>>
    %c0_i32_21 = arith.constant 0 : i32
    %39 = tpu.memref_slice %arg2[%38, %c0_i32_21] : memref<64x32xf32, #tpu.memory_space<any>> -> memref<1x32xf32, #tpu.memory_space<any>>
    %c7_i32_22 = arith.constant 7 : i32
    %c0_i32_23 = arith.constant 0 : i32
    %40 = tpu.memref_slice %arg3[%c7_i32_22, %c0_i32_23] : memref<16x32xf32, #tpu.memory_space<vmem>> -> memref<1x32xf32, #tpu.memory_space<vmem>>
    tpu.enqueue_dma source(%39 : memref<1x32xf32, #tpu.memory_space<any>>) target(%40 : memref<1x32xf32, #tpu.memory_space<vmem>>) target_semaphore(%arg4 : memref<!tpu.dma_semaphore, #tpu.memory_space<semaphore_mem>>)
    %c8_i32 = arith.constant 8 : i32
    %41 = arith.addi %0, %c8_i32 : i32
    %42 = arith.index_cast %41 : i32 to index
    %43 = memref.load %arg1[%42] : memref<16xi32, #tpu.memory_space<smem>>
    %c0_i32_24 = arith.constant 0 : i32
    %44 = tpu.memref_slice %arg2[%43, %c0_i32_24] : memref<64x32xf32, #tpu.memory_space<any>> -> memref<1x32xf32, #tpu.memory_space<any>>
    %c8_i32_25 = arith.constant 8 : i32
    %c0_i32_26 = arith.constant 0 : i32
    %45 = tpu.memref_slice %arg3[%c8_i32_25, %c0_i32_26] : memref<16x32xf32, #tpu.memory_space<vmem>> -> memref<1x32xf32, #tpu.memory_space<vmem>>
    tpu.enqueue_dma source(%44 : memref<1x32xf32, #tpu.memory_space<any>>) target(%45 : memref<1x32xf32, #tpu.memory_space<vmem>>) target_semaphore(%arg4 : memref<!tpu.dma_semaphore, #tpu.memory_space<semaphore_mem>>)
    %c9_i32 = arith.constant 9 : i32
    %46 = arith.addi %0, %c9_i32 : i32
    %47 = arith.index_cast %46 : i32 to index
    %48 = memref.load %arg1[%47] : memref<16xi32, #tpu.memory_space<smem>>
    %c0_i32_27 = arith.constant 0 : i32
    %49 = tpu.memref_slice %arg2[%48, %c0_i32_27] : memref<64x32xf32, #tpu.memory_space<any>> -> memref<1x32xf32, #tpu.memory_space<any>>
    %c9_i32_28 = arith.constant 9 : i32
    %c0_i32_29 = arith.constant 0 : i32
    %50 = tpu.memref_slice %arg3[%c9_i32_28, %c0_i32_29] : memref<16x32xf32, #tpu.memory_space<vmem>> -> memref<1x32xf32, #tpu.memory_space<vmem>>
    tpu.enqueue_dma source(%49 : memref<1x32xf32, #tpu.memory_space<any>>) target(%50 : memref<1x32xf32, #tpu.memory_space<vmem>>) target_semaphore(%arg4 : memref<!tpu.dma_semaphore, #tpu.memory_space<semaphore_mem>>)
    %c10_i32 = arith.constant 10 : i32
    %51 = arith.addi %0, %c10_i32 : i32
    %52 = arith.index_cast %51 : i32 to index
    %53 = memref.load %arg1[%52] : memref<16xi32, #tpu.memory_space<smem>>
    %c0_i32_30 = arith.constant 0 : i32
    %54 = tpu.memref_slice %arg2[%53, %c0_i32_30] : memref<64x32xf32, #tpu.memory_space<any>> -> memref<1x32xf32, #tpu.memory_space<any>>
    %c10_i32_31 = arith.constant 10 : i32
    %c0_i32_32 = arith.constant 0 : i32
    %55 = tpu.memref_slice %arg3[%c10_i32_31, %c0_i32_32] : memref<16x32xf32, #tpu.memory_space<vmem>> -> memref<1x32xf32, #tpu.memory_space<vmem>>
    tpu.enqueue_dma source(%54 : memref<1x32xf32, #tpu.memory_space<any>>) target(%55 : memref<1x32xf32, #tpu.memory_space<vmem>>) target_semaphore(%arg4 : memref<!tpu.dma_semaphore, #tpu.memory_space<semaphore_mem>>)
    %c11_i32 = arith.constant 11 : i32
    %56 = arith.addi %0, %c11_i32 : i32
    %57 = arith.index_cast %56 : i32 to index
    %58 = memref.load %arg1[%57] : memref<16xi32, #tpu.memory_space<smem>>
    %c0_i32_33 = arith.constant 0 : i32
    %59 = tpu.memref_slice %arg2[%58, %c0_i32_33] : memref<64x32xf32, #tpu.memory_space<any>> -> memref<1x32xf32, #tpu.memory_space<any>>
    %c11_i32_34 = arith.constant 11 : i32
    %c0_i32_35 = arith.constant 0 : i32
    %60 = tpu.memref_slice %arg3[%c11_i32_34, %c0_i32_35] : memref<16x32xf32, #tpu.memory_space<vmem>> -> memref<1x32xf32, #tpu.memory_space<vmem>>
    tpu.enqueue_dma source(%59 : memref<1x32xf32, #tpu.memory_space<any>>) target(%60 : memref<1x32xf32, #tpu.memory_space<vmem>>) target_semaphore(%arg4 : memref<!tpu.dma_semaphore, #tpu.memory_space<semaphore_mem>>)
    %c12_i32 = arith.constant 12 : i32
    %61 = arith.addi %0, %c12_i32 : i32
    %62 = arith.index_cast %61 : i32 to index
    %63 = memref.load %arg1[%62] : memref<16xi32, #tpu.memory_space<smem>>
    %c0_i32_36 = arith.constant 0 : i32
    %64 = tpu.memref_slice %arg2[%63, %c0_i32_36] : memref<64x32xf32, #tpu.memory_space<any>> -> memref<1x32xf32, #tpu.memory_space<any>>
    %c12_i32_37 = arith.constant 12 : i32
    %c0_i32_38 = arith.constant 0 : i32
    %65 = tpu.memref_slice %arg3[%c12_i32_37, %c0_i32_38] : memref<16x32xf32, #tpu.memory_space<vmem>> -> memref<1x32xf32, #tpu.memory_space<vmem>>
    tpu.enqueue_dma source(%64 : memref<1x32xf32, #tpu.memory_space<any>>) target(%65 : memref<1x32xf32, #tpu.memory_space<vmem>>) target_semaphore(%arg4 : memref<!tpu.dma_semaphore, #tpu.memory_space<semaphore_mem>>)
    %c13_i32 = arith.constant 13 : i32
    %66 = arith.addi %0, %c13_i32 : i32
    %67 = arith.index_cast %66 : i32 to index
    %68 = memref.load %arg1[%67] : memref<16xi32, #tpu.memory_space<smem>>
    %c0_i32_39 = arith.constant 0 : i32
    %69 = tpu.memref_slice %arg2[%68, %c0_i32_39] : memref<64x32xf32, #tpu.memory_space<any>> -> memref<1x32xf32, #tpu.memory_space<any>>
    %c13_i32_40 = arith.constant 13 : i32
    %c0_i32_41 = arith.constant 0 : i32
    %70 = tpu.memref_slice %arg3[%c13_i32_40, %c0_i32_41] : memref<16x32xf32, #tpu.memory_space<vmem>> -> memref<1x32xf32, #tpu.memory_space<vmem>>
    tpu.enqueue_dma source(%69 : memref<1x32xf32, #tpu.memory_space<any>>) target(%70 : memref<1x32xf32, #tpu.memory_space<vmem>>) target_semaphore(%arg4 : memref<!tpu.dma_semaphore, #tpu.memory_space<semaphore_mem>>)
    %c14_i32 = arith.constant 14 : i32
    %71 = arith.addi %0, %c14_i32 : i32
    %72 = arith.index_cast %71 : i32 to index
    %73 = memref.load %arg1[%72] : memref<16xi32, #tpu.memory_space<smem>>
    %c0_i32_42 = arith.constant 0 : i32
    %74 = tpu.memref_slice %arg2[%73, %c0_i32_42] : memref<64x32xf32, #tpu.memory_space<any>> -> memref<1x32xf32, #tpu.memory_space<any>>
    %c14_i32_43 = arith.constant 14 : i32
    %c0_i32_44 = arith.constant 0 : i32
    %75 = tpu.memref_slice %arg3[%c14_i32_43, %c0_i32_44] : memref<16x32xf32, #tpu.memory_space<vmem>> -> memref<1x32xf32, #tpu.memory_space<vmem>>
    tpu.enqueue_dma source(%74 : memref<1x32xf32, #tpu.memory_space<any>>) target(%75 : memref<1x32xf32, #tpu.memory_space<vmem>>) target_semaphore(%arg4 : memref<!tpu.dma_semaphore, #tpu.memory_space<semaphore_mem>>)
    %c15_i32 = arith.constant 15 : i32
    %76 = arith.addi %0, %c15_i32 : i32
    %77 = arith.index_cast %76 : i32 to index
    %78 = memref.load %arg1[%77] : memref<16xi32, #tpu.memory_space<smem>>
    %c0_i32_45 = arith.constant 0 : i32
    %79 = tpu.memref_slice %arg2[%78, %c0_i32_45] : memref<64x32xf32, #tpu.memory_space<any>> -> memref<1x32xf32, #tpu.memory_space<any>>
    %c15_i32_46 = arith.constant 15 : i32
    %c0_i32_47 = arith.constant 0 : i32
    %80 = tpu.memref_slice %arg3[%c15_i32_46, %c0_i32_47] : memref<16x32xf32, #tpu.memory_space<vmem>> -> memref<1x32xf32, #tpu.memory_space<vmem>>
    tpu.enqueue_dma source(%79 : memref<1x32xf32, #tpu.memory_space<any>>) target(%80 : memref<1x32xf32, #tpu.memory_space<vmem>>) target_semaphore(%arg4 : memref<!tpu.dma_semaphore, #tpu.memory_space<semaphore_mem>>)
    %c0_i32_48 = arith.constant 0 : i32
    %c0_i32_49 = arith.constant 0 : i32
    %81 = tpu.memref_slice %arg2[%c0_i32_48, %c0_i32_49] : memref<64x32xf32, #tpu.memory_space<any>> -> memref<1x32xf32, #tpu.memory_space<any>>
    %c0_i32_50 = arith.constant 0 : i32
    %c0_i32_51 = arith.constant 0 : i32
    %82 = tpu.memref_slice %arg3[%c0_i32_50, %c0_i32_51] : memref<16x32xf32, #tpu.memory_space<vmem>> -> memref<1x32xf32, #tpu.memory_space<vmem>>
    tpu.wait_dma2 semaphore(%arg4 : memref<!tpu.dma_semaphore, #tpu.memory_space<semaphore_mem>>) src(%81 : memref<1x32xf32, #tpu.memory_space<any>>) dst(%82 : memref<1x32xf32, #tpu.memory_space<vmem>>)
    %c0_i32_52 = arith.constant 0 : i32
    %c0_i32_53 = arith.constant 0 : i32
    %83 = tpu.memref_slice %arg2[%c0_i32_52, %c0_i32_53] : memref<64x32xf32, #tpu.memory_space<any>> -> memref<1x32xf32, #tpu.memory_space<any>>
    %c1_i32_54 = arith.constant 1 : i32
    %c0_i32_55 = arith.constant 0 : i32
    %84 = tpu.memref_slice %arg3[%c1_i32_54, %c0_i32_55] : memref<16x32xf32, #tpu.memory_space<vmem>> -> memref<1x32xf32, #tpu.memory_space<vmem>>
    tpu.wait_dma2 semaphore(%arg4 : memref<!tpu.dma_semaphore, #tpu.memory_space<semaphore_mem>>) src(%83 : memref<1x32xf32, #tpu.memory_space<any>>) dst(%84 : memref<1x32xf32, #tpu.memory_space<vmem>>)
    %c0_i32_56 = arith.constant 0 : i32
    %c0_i32_57 = arith.constant 0 : i32
    %85 = tpu.memref_slice %arg2[%c0_i32_56, %c0_i32_57] : memref<64x32xf32, #tpu.memory_space<any>> -> memref<1x32xf32, #tpu.memory_space<any>>
    %c2_i32_58 = arith.constant 2 : i32
    %c0_i32_59 = arith.constant 0 : i32
    %86 = tpu.memref_slice %arg3[%c2_i32_58, %c0_i32_59] : memref<16x32xf32, #tpu.memory_space<vmem>> -> memref<1x32xf32, #tpu.memory_space<vmem>>
    tpu.wait_dma2 semaphore(%arg4 : memref<!tpu.dma_semaphore, #tpu.memory_space<semaphore_mem>>) src(%85 : memref<1x32xf32, #tpu.memory_space<any>>) dst(%86 : memref<1x32xf32, #tpu.memory_space<vmem>>)
    %c0_i32_60 = arith.constant 0 : i32
    %c0_i32_61 = arith.constant 0 : i32
    %87 = tpu.memref_slice %arg2[%c0_i32_60, %c0_i32_61] : memref<64x32xf32, #tpu.memory_space<any>> -> memref<1x32xf32, #tpu.memory_space<any>>
    %c3_i32_62 = arith.constant 3 : i32
    %c0_i32_63 = arith.constant 0 : i32
    %88 = tpu.memref_slice %arg3[%c3_i32_62, %c0_i32_63] : memref<16x32xf32, #tpu.memory_space<vmem>> -> memref<1x32xf32, #tpu.memory_space<vmem>>
    tpu.wait_dma2 semaphore(%arg4 : memref<!tpu.dma_semaphore, #tpu.memory_space<semaphore_mem>>) src(%87 : memref<1x32xf32, #tpu.memory_space<any>>) dst(%88 : memref<1x32xf32, #tpu.memory_space<vmem>>)
    %c0_i32_64 = arith.constant 0 : i32
    %c0_i32_65 = arith.constant 0 : i32
    %89 = tpu.memref_slice %arg2[%c0_i32_64, %c0_i32_65] : memref<64x32xf32, #tpu.memory_space<any>> -> memref<1x32xf32, #tpu.memory_space<any>>
    %c4_i32_66 = arith.constant 4 : i32
    %c0_i32_67 = arith.constant 0 : i32
    %90 = tpu.memref_slice %arg3[%c4_i32_66, %c0_i32_67] : memref<16x32xf32, #tpu.memory_space<vmem>> -> memref<1x32xf32, #tpu.memory_space<vmem>>
    tpu.wait_dma2 semaphore(%arg4 : memref<!tpu.dma_semaphore, #tpu.memory_space<semaphore_mem>>) src(%89 : memref<1x32xf32, #tpu.memory_space<any>>) dst(%90 : memref<1x32xf32, #tpu.memory_space<vmem>>)
    %c0_i32_68 = arith.constant 0 : i32
    %c0_i32_69 = arith.constant 0 : i32
    %91 = tpu.memref_slice %arg2[%c0_i32_68, %c0_i32_69] : memref<64x32xf32, #tpu.memory_space<any>> -> memref<1x32xf32, #tpu.memory_space<any>>
    %c5_i32_70 = arith.constant 5 : i32
    %c0_i32_71 = arith.constant 0 : i32
    %92 = tpu.memref_slice %arg3[%c5_i32_70, %c0_i32_71] : memref<16x32xf32, #tpu.memory_space<vmem>> -> memref<1x32xf32, #tpu.memory_space<vmem>>
    tpu.wait_dma2 semaphore(%arg4 : memref<!tpu.dma_semaphore, #tpu.memory_space<semaphore_mem>>) src(%91 : memref<1x32xf32, #tpu.memory_space<any>>) dst(%92 : memref<1x32xf32, #tpu.memory_space<vmem>>)
    %c0_i32_72 = arith.constant 0 : i32
    %c0_i32_73 = arith.constant 0 : i32
    %93 = tpu.memref_slice %arg2[%c0_i32_72, %c0_i32_73] : memref<64x32xf32, #tpu.memory_space<any>> -> memref<1x32xf32, #tpu.memory_space<any>>
    %c6_i32_74 = arith.constant 6 : i32
    %c0_i32_75 = arith.constant 0 : i32
    %94 = tpu.memref_slice %arg3[%c6_i32_74, %c0_i32_75] : memref<16x32xf32, #tpu.memory_space<vmem>> -> memref<1x32xf32, #tpu.memory_space<vmem>>
    tpu.wait_dma2 semaphore(%arg4 : memref<!tpu.dma_semaphore, #tpu.memory_space<semaphore_mem>>) src(%93 : memref<1x32xf32, #tpu.memory_space<any>>) dst(%94 : memref<1x32xf32, #tpu.memory_space<vmem>>)
    %c0_i32_76 = arith.constant 0 : i32
    %c0_i32_77 = arith.constant 0 : i32
    %95 = tpu.memref_slice %arg2[%c0_i32_76, %c0_i32_77] : memref<64x32xf32, #tpu.memory_space<any>> -> memref<1x32xf32, #tpu.memory_space<any>>
    %c7_i32_78 = arith.constant 7 : i32
    %c0_i32_79 = arith.constant 0 : i32
    %96 = tpu.memref_slice %arg3[%c7_i32_78, %c0_i32_79] : memref<16x32xf32, #tpu.memory_space<vmem>> -> memref<1x32xf32, #tpu.memory_space<vmem>>
    tpu.wait_dma2 semaphore(%arg4 : memref<!tpu.dma_semaphore, #tpu.memory_space<semaphore_mem>>) src(%95 : memref<1x32xf32, #tpu.memory_space<any>>) dst(%96 : memref<1x32xf32, #tpu.memory_space<vmem>>)
    %c0_i32_80 = arith.constant 0 : i32
    %c0_i32_81 = arith.constant 0 : i32
    %97 = tpu.memref_slice %arg2[%c0_i32_80, %c0_i32_81] : memref<64x32xf32, #tpu.memory_space<any>> -> memref<1x32xf32, #tpu.memory_space<any>>
    %c8_i32_82 = arith.constant 8 : i32
    %c0_i32_83 = arith.constant 0 : i32
    %98 = tpu.memref_slice %arg3[%c8_i32_82, %c0_i32_83] : memref<16x32xf32, #tpu.memory_space<vmem>> -> memref<1x32xf32, #tpu.memory_space<vmem>>
    tpu.wait_dma2 semaphore(%arg4 : memref<!tpu.dma_semaphore, #tpu.memory_space<semaphore_mem>>) src(%97 : memref<1x32xf32, #tpu.memory_space<any>>) dst(%98 : memref<1x32xf32, #tpu.memory_space<vmem>>)
    %c0_i32_84 = arith.constant 0 : i32
    %c0_i32_85 = arith.constant 0 : i32
    %99 = tpu.memref_slice %arg2[%c0_i32_84, %c0_i32_85] : memref<64x32xf32, #tpu.memory_space<any>> -> memref<1x32xf32, #tpu.memory_space<any>>
    %c9_i32_86 = arith.constant 9 : i32
    %c0_i32_87 = arith.constant 0 : i32
    %100 = tpu.memref_slice %arg3[%c9_i32_86, %c0_i32_87] : memref<16x32xf32, #tpu.memory_space<vmem>> -> memref<1x32xf32, #tpu.memory_space<vmem>>
    tpu.wait_dma2 semaphore(%arg4 : memref<!tpu.dma_semaphore, #tpu.memory_space<semaphore_mem>>) src(%99 : memref<1x32xf32, #tpu.memory_space<any>>) dst(%100 : memref<1x32xf32, #tpu.memory_space<vmem>>)
    %c0_i32_88 = arith.constant 0 : i32
    %c0_i32_89 = arith.constant 0 : i32
    %101 = tpu.memref_slice %arg2[%c0_i32_88, %c0_i32_89] : memref<64x32xf32, #tpu.memory_space<any>> -> memref<1x32xf32, #tpu.memory_space<any>>
    %c10_i32_90 = arith.constant 10 : i32
    %c0_i32_91 = arith.constant 0 : i32
    %102 = tpu.memref_slice %arg3[%c10_i32_90, %c0_i32_91] : memref<16x32xf32, #tpu.memory_space<vmem>> -> memref<1x32xf32, #tpu.memory_space<vmem>>
    tpu.wait_dma2 semaphore(%arg4 : memref<!tpu.dma_semaphore, #tpu.memory_space<semaphore_mem>>) src(%101 : memref<1x32xf32, #tpu.memory_space<any>>) dst(%102 : memref<1x32xf32, #tpu.memory_space<vmem>>)
    %c0_i32_92 = arith.constant 0 : i32
    %c0_i32_93 = arith.constant 0 : i32
    %103 = tpu.memref_slice %arg2[%c0_i32_92, %c0_i32_93] : memref<64x32xf32, #tpu.memory_space<any>> -> memref<1x32xf32, #tpu.memory_space<any>>
    %c11_i32_94 = arith.constant 11 : i32
    %c0_i32_95 = arith.constant 0 : i32
    %104 = tpu.memref_slice %arg3[%c11_i32_94, %c0_i32_95] : memref<16x32xf32, #tpu.memory_space<vmem>> -> memref<1x32xf32, #tpu.memory_space<vmem>>
    tpu.wait_dma2 semaphore(%arg4 : memref<!tpu.dma_semaphore, #tpu.memory_space<semaphore_mem>>) src(%103 : memref<1x32xf32, #tpu.memory_space<any>>) dst(%104 : memref<1x32xf32, #tpu.memory_space<vmem>>)
    %c0_i32_96 = arith.constant 0 : i32
    %c0_i32_97 = arith.constant 0 : i32
    %105 = tpu.memref_slice %arg2[%c0_i32_96, %c0_i32_97] : memref<64x32xf32, #tpu.memory_space<any>> -> memref<1x32xf32, #tpu.memory_space<any>>
    %c12_i32_98 = arith.constant 12 : i32
    %c0_i32_99 = arith.constant 0 : i32
    %106 = tpu.memref_slice %arg3[%c12_i32_98, %c0_i32_99] : memref<16x32xf32, #tpu.memory_space<vmem>> -> memref<1x32xf32, #tpu.memory_space<vmem>>
    tpu.wait_dma2 semaphore(%arg4 : memref<!tpu.dma_semaphore, #tpu.memory_space<semaphore_mem>>) src(%105 : memref<1x32xf32, #tpu.memory_space<any>>) dst(%106 : memref<1x32xf32, #tpu.memory_space<vmem>>)
    %c0_i32_100 = arith.constant 0 : i32
    %c0_i32_101 = arith.constant 0 : i32
    %107 = tpu.memref_slice %arg2[%c0_i32_100, %c0_i32_101] : memref<64x32xf32, #tpu.memory_space<any>> -> memref<1x32xf32, #tpu.memory_space<any>>
    %c13_i32_102 = arith.constant 13 : i32
    %c0_i32_103 = arith.constant 0 : i32
    %108 = tpu.memref_slice %arg3[%c13_i32_102, %c0_i32_103] : memref<16x32xf32, #tpu.memory_space<vmem>> -> memref<1x32xf32, #tpu.memory_space<vmem>>
    tpu.wait_dma2 semaphore(%arg4 : memref<!tpu.dma_semaphore, #tpu.memory_space<semaphore_mem>>) src(%107 : memref<1x32xf32, #tpu.memory_space<any>>) dst(%108 : memref<1x32xf32, #tpu.memory_space<vmem>>)
    %c0_i32_104 = arith.constant 0 : i32
    %c0_i32_105 = arith.constant 0 : i32
    %109 = tpu.memref_slice %arg2[%c0_i32_104, %c0_i32_105] : memref<64x32xf32, #tpu.memory_space<any>> -> memref<1x32xf32, #tpu.memory_space<any>>
    %c14_i32_106 = arith.constant 14 : i32
    %c0_i32_107 = arith.constant 0 : i32
    %110 = tpu.memref_slice %arg3[%c14_i32_106, %c0_i32_107] : memref<16x32xf32, #tpu.memory_space<vmem>> -> memref<1x32xf32, #tpu.memory_space<vmem>>
    tpu.wait_dma2 semaphore(%arg4 : memref<!tpu.dma_semaphore, #tpu.memory_space<semaphore_mem>>) src(%109 : memref<1x32xf32, #tpu.memory_space<any>>) dst(%110 : memref<1x32xf32, #tpu.memory_space<vmem>>)
    %c0_i32_108 = arith.constant 0 : i32
    %c0_i32_109 = arith.constant 0 : i32
    %111 = tpu.memref_slice %arg2[%c0_i32_108, %c0_i32_109] : memref<64x32xf32, #tpu.memory_space<any>> -> memref<1x32xf32, #tpu.memory_space<any>>
    %c15_i32_110 = arith.constant 15 : i32
    %c0_i32_111 = arith.constant 0 : i32
    %112 = tpu.memref_slice %arg3[%c15_i32_110, %c0_i32_111] : memref<16x32xf32, #tpu.memory_space<vmem>> -> memref<1x32xf32, #tpu.memory_space<vmem>>
    tpu.wait_dma2 semaphore(%arg4 : memref<!tpu.dma_semaphore, #tpu.memory_space<semaphore_mem>>) src(%111 : memref<1x32xf32, #tpu.memory_space<any>>) dst(%112 : memref<1x32xf32, #tpu.memory_space<vmem>>)
    return
  }
  func.func @transform_1(%arg0: i32, %arg1: memref<16xi32, #tpu.memory_space<smem>>) -> (i32, i32) {
    %c0_i32 = arith.constant 0 : i32
    %c0_i32_0 = arith.constant 0 : i32
    return %arg0, %c0_i32 : i32, i32
  }
}

</mosaic_0001>

<llo_original>
// kernel: tpu_custom_call.1
$region0: #{tpu_custom_call.1}
  #allocation0 [shape = 'u32[]', space=smem, size = 0x4, offset = 0x4, fixed_abs, tag = 'smem constant byte address 0x4 - core index']
  #allocation1 [shape = 'u32[72,128]{1,0:T(1,128)}', space=vmem, size = 0x9000, scoped, tag = 'internal scratch']
  #allocation2 [shape = 's32[1]{0}', space=sflag, size = 0x4, scoped, tag = 'scratch operand']
  #allocation3 [shape = 's32[1]{0}', space=sflag, size = 0x4, scoped, tag = 'scoped memory for tpu_custom_call.1']
  #allocation4 [shape = 'u8[512]{0}', space=smem, size = 0x200, scoped, tag = 'prefetched SMEM operand 0']
  #allocation7 [shape = 's32[]', space=sflag, size = 0x4, offset = 0, fixed_abs, tag = 'sflag constant byte address 0x0 - dummy sync flag']
  #allocation8 [shape = 's32[]', space=sflag, size = 0x4, offset = 0, fixed_abs, tag = 'sflag constant byte address 0x0 - dummy sync flag']
  #allocation9 [shape = 's32[]', space=sflag, size = 0x4, offset = 0, fixed_abs, tag = 'sflag constant byte address 0x0 - dummy sync flag']
  #allocation10 [shape = 's32[]', space=sflag, size = 0x4, offset = 0, fixed_abs, tag = 'sflag constant byte address 0x0 - dummy sync flag']
  #allocation11 [shape = 's32[]', space=sflag, size = 0x4, offset = 0, fixed_abs, tag = 'sflag constant byte address 0x0 - dummy sync flag']
  #allocation12 [shape = 's32[]', space=sflag, size = 0x4, offset = 0, fixed_abs, tag = 'sflag constant byte address 0x0 - dummy sync flag']
  #allocation13 [shape = 's32[]', space=sflag, size = 0x4, offset = 0, fixed_abs, tag = 'sflag constant byte address 0x0 - dummy sync flag']
  #allocation14 [shape = 's32[]', space=sflag, size = 0x4, offset = 0, fixed_abs, tag = 'sflag constant byte address 0x0 - dummy sync flag']
  #allocation15 [shape = 's32[]', space=sflag, size = 0x4, offset = 0, fixed_abs, tag = 'sflag constant byte address 0x0 - dummy sync flag']
  #allocation16 [shape = 's32[]', space=sflag, size = 0x4, offset = 0, fixed_abs, tag = 'sflag constant byte address 0x0 - dummy sync flag']
  #allocation17 [shape = 's32[]', space=sflag, size = 0x4, offset = 0, fixed_abs, tag = 'sflag constant byte address 0x0 - dummy sync flag']
  #allocation18 [shape = 's32[]', space=sflag, size = 0x4, offset = 0, fixed_abs, tag = 'sflag constant byte address 0x0 - dummy sync flag']
  #allocation19 [shape = 's32[]', space=sflag, size = 0x4, offset = 0, fixed_abs, tag = 'sflag constant byte address 0x0 - dummy sync flag']
  #allocation20 [shape = 's32[]', space=sflag, size = 0x4, offset = 0, fixed_abs, tag = 'sflag constant byte address 0x0 - dummy sync flag']
  #allocation21 [shape = 's32[]', space=sflag, size = 0x4, offset = 0, fixed_abs, tag = 'sflag constant byte address 0x0 - dummy sync flag']
  #allocation22 [shape = 's32[]', space=sflag, size = 0x4, offset = 0, fixed_abs, tag = 'sflag constant byte address 0x0 - dummy sync flag']
  %s0 = inlined_call_operand.vmem [shape: s32[16], index: 0, kind: input, shape index: {}]
  %s1 = inlined_call_operand.vmem [shape: f32[64,32], index: 1, kind: input, shape index: {}]
  %s2 = inlined_call_operand.hbm [shape: f32[16,32], index: 2, kind: output, shape index: {}]
  %s3 = sld [smem:[#allocation0]]
  $region490: #{tpu_custom_call.1} parent=0
    _
  %s5 = ssub.s32 1, %s3
  %s6 = scalar_select 0, %s5, %s3
  %s8 = sshll.u32 %s0, 4
  %s9 = int_to_ptr.vmem [resolvable:$true] %s8
  %11 = dma.vmem_to_smem %s9, 16, [#allocation4], [#allocation3]
  %13 = dma.done [#allocation3], 16
  %14 = sfence
  $region1: #{tpu_custom_call.1} parent=0
    #allocation5 [shape = 'u8[8192]{0}', space=vmem, size = 0x2000, scoped, tag = 'output window, operand 0, single buffered']
    #allocation6 [shape = 's32[1]{0}', space=sflag, size = 0x4, scoped, tag = 'scoped memory for tpu_custom_call.1']
    %15 = vsyncpa [#allocation6], 0
    %s16 = smul.u32 0, 16
    %s17 = sld [smem:[#allocation4 + %s16]]
    %s18 = scalar_lea.vmem %s1, %s17
    // Predicated region
    $region2: #{tpu_custom_call.1} parent=1 // pred_check
      _
    $region3: #{tpu_custom_call.1} parent=1 // pred_check_branch
      %20 = sbr.rel target = $region5
    $region4: #{tpu_custom_call.1} parent=1 // pred_region
      // Predicated region
      $region17: #{tpu_custom_call.1} parent=4 // pred_check
        _
      $region18: #{tpu_custom_call.1} parent=4 // pred_check_branch
        %36 = sbr.rel (0) target = $region20
      $region19: #{tpu_custom_call.1} parent=4 // pred_region
        %s38 = ssub.s32 2, 1
        loop: start=0, step=1, limit=1
        $region21: #{tpu_custom_call.1} parent=19 // loop_pre_header
          _
        $region22: #{tpu_custom_call.1} parent=19 // loop_header
          %s40 = sphi 0, %s44
          %p41 = scmp.ge.s32.totalorder %s40, 1
          %s45 = sphi %s18, %s18
          %s46 = sphi [#allocation5], [#allocation5]
        $region23: #{tpu_custom_call.1} parent=19 // loop_header_branch
          %43 = sbr.rel (%p41) target = $region27
        $region24: #{tpu_custom_call.1} parent=19 // loop_body
          %v47 = vld [vmem:[%s45] sm:%s38]
          %48 = vst [vmem:[%s46] sm:%s38] %v47
        $region25: #{tpu_custom_call.1} parent=19 // loop_footer
          %s44 = sadd.s32 1, %s40
        $region26: #{tpu_custom_call.1} parent=19 // loop_footer_branch
          %39 = sbr.rel target = $region22
        $region27: #{tpu_custom_call.1} parent=19 // loop_exit
          _
      $region20: #{tpu_custom_call.1} parent=4 // pred_fallthru
        _
    $region5: #{tpu_custom_call.1} parent=1 // pred_fallthru
      _
    // Predicated region
    $region6: #{tpu_custom_call.1} parent=1 // pred_check
      _
    $region7: #{tpu_custom_call.1} parent=1 // pred_check_branch
      %22 = sbr.rel (0) target = $region9
    $region8: #{tpu_custom_call.1} parent=1 // pred_region
      %s24 = ssub.s32 2, 1
      loop: start=0, step=1, limit=1
      $region10: #{tpu_custom_call.1} parent=8 // loop_pre_header
        _
      $region11: #{tpu_custom_call.1} parent=8 // loop_header
        %s26 = sphi 0, %s30
        %p27 = scmp.ge.s32.totalorder %s26, 1
        %s31 = sphi %s18, %s18
        %s32 = sphi [#allocation5], [#allocation5]
      $region12: #{tpu_custom_call.1} parent=8 // loop_header_branch
        %29 = sbr.rel (%p27) target = $region16
      $region13: #{tpu_custom_call.1} parent=8 // loop_body
        %v33 = vld [vmem:[%s31] sm:%s24]
        %34 = vst [vmem:[%s32] sm:%s24] %v33
      $region14: #{tpu_custom_call.1} parent=8 // loop_footer
        %s30 = sadd.s32 1, %s26
      $region15: #{tpu_custom_call.1} parent=8 // loop_footer_branch
        %25 = sbr.rel target = $region11
      $region16: #{tpu_custom_call.1} parent=8 // loop_exit
        _
    $region9: #{tpu_custom_call.1} parent=1 // pred_fallthru
      _
    // Predicated region
    $region28: #{tpu_custom_call.1} parent=1 // pred_check
      _
    $region29: #{tpu_custom_call.1} parent=1 // pred_check_branch
      %51 = sbr.rel (0) target = $region31
    $region30: #{tpu_custom_call.1} parent=1 // pred_region
      %52 = vsyncadd [#allocation2], 16
    $region31: #{tpu_custom_call.1} parent=1 // pred_fallthru
      _
    %s53 = sadd.s32 %s16, 1
    %s54 = sld [smem:[#allocation4 + %s53]]
    %s55 = scalar_lea.vmem %s1, %s54
    %s56 = scalar_lea.vmem [#allocation5], 1
    // Predicated region
    $region32: #{tpu_custom_call.1} parent=1 // pred_check
      _
    $region33: #{tpu_custom_call.1} parent=1 // pred_check_branch
      %58 = sbr.rel target = $region35
    $region34: #{tpu_custom_call.1} parent=1 // pred_region
      // Predicated region
      $region47: #{tpu_custom_call.1} parent=34 // pred_check
        _
      $region48: #{tpu_custom_call.1} parent=34 // pred_check_branch
        %74 = sbr.rel (0) target = $region50
      $region49: #{tpu_custom_call.1} parent=34 // pred_region
        %s76 = ssub.s32 2, 1
        loop: start=0, step=1, limit=1
        $region51: #{tpu_custom_call.1} parent=49 // loop_pre_header
          _
        $region52: #{tpu_custom_call.1} parent=49 // loop_header
          %s78 = sphi 0, %s82
          %p79 = scmp.ge.s32.totalorder %s78, 1
          %s83 = sphi %s55, %s55
          %s84 = sphi %s56, %s56
        $region53: #{tpu_custom_call.1} parent=49 // loop_header_branch
          %81 = sbr.rel (%p79) target = $region57
        $region54: #{tpu_custom_call.1} parent=49 // loop_body
          %v85 = vld [vmem:[%s83] sm:%s76]
          %86 = vst [vmem:[%s84] sm:%s76] %v85
        $region55: #{tpu_custom_call.1} parent=49 // loop_footer
          %s82 = sadd.s32 1, %s78
        $region56: #{tpu_custom_call.1} parent=49 // loop_footer_branch
          %77 = sbr.rel target = $region52
        $region57: #{tpu_custom_call.1} parent=49 // loop_exit
          _
      $region50: #{tpu_custom_call.1} parent=34 // pred_fallthru
        _
    $region35: #{tpu_custom_call.1} parent=1 // pred_fallthru
      _
    // Predicated region
    $region36: #{tpu_custom_call.1} parent=1 // pred_check
      _
    $region37: #{tpu_custom_call.1} parent=1 // pred_check_branch
      %60 = sbr.rel (0) target = $region39
    $region38: #{tpu_custom_call.1} parent=1 // pred_region
      %s62 = ssub.s32 2, 1
      loop: start=0, step=1, limit=1
      $region40: #{tpu_custom_call.1} parent=38 // loop_pre_header
        _
      $region41: #{tpu_custom_call.1} parent=38 // loop_header
        %s64 = sphi 0, %s68
        %p65 = scmp.ge.s32.totalorder %s64, 1
        %s69 = sphi %s55, %s55
        %s70 = sphi %s56, %s56
      $region42: #{tpu_custom_call.1} parent=38 // loop_header_branch
        %67 = sbr.rel (%p65) target = $region46
      $region43: #{tpu_custom_call.1} parent=38 // loop_body
        %v71 = vld [vmem:[%s69] sm:%s62]
        %72 = vst [vmem:[%s70] sm:%s62] %v71
      $region44: #{tpu_custom_call.1} parent=38 // loop_footer
        %s68 = sadd.s32 1, %s64
      $region45: #{tpu_custom_call.1} parent=38 // loop_footer_branch
        %63 = sbr.rel target = $region41
      $region46: #{tpu_custom_call.1} parent=38 // loop_exit
        _
    $region39: #{tpu_custom_call.1} parent=1 // pred_fallthru
      _
    // Predicated region
    $region58: #{tpu_custom_call.1} parent=1 // pred_check
      _
    $region59: #{tpu_custom_call.1} parent=1 // pred_check_branch
      %89 = sbr.rel (0) target = $region61
    $region60: #{tpu_custom_call.1} parent=1 // pred_region
      %90 = vsyncadd [#allocation2], 16
    $region61: #{tpu_custom_call.1} parent=1 // pred_fallthru
      _
    %s91 = sadd.s32 %s16, 2
    %s92 = sld [smem:[#allocation4 + %s91]]
    %s93 = scalar_lea.vmem %s1, %s92
    %s94 = scalar_lea.vmem [#allocation5], 2
    // Predicated region
    $region62: #{tpu_custom_call.1} parent=1 // pred_check
      _
    $region63: #{tpu_custom_call.1} parent=1 // pred_check_branch
      %96 = sbr.rel target = $region65
    $region64: #{tpu_custom_call.1} parent=1 // pred_region
      // Predicated region
      $region77: #{tpu_custom_call.1} parent=64 // pred_check
        _
      $region78: #{tpu_custom_call.1} parent=64 // pred_check_branch
        %112 = sbr.rel (0) target = $region80
      $region79: #{tpu_custom_call.1} parent=64 // pred_region
        %s114 = ssub.s32 2, 1
        loop: start=0, step=1, limit=1
        $region81: #{tpu_custom_call.1} parent=79 // loop_pre_header
          _
        $region82: #{tpu_custom_call.1} parent=79 // loop_header
          %s116 = sphi 0, %s120
          %p117 = scmp.ge.s32.totalorder %s116, 1
          %s121 = sphi %s93, %s93
          %s122 = sphi %s94, %s94
        $region83: #{tpu_custom_call.1} parent=79 // loop_header_branch
          %119 = sbr.rel (%p117) target = $region87
        $region84: #{tpu_custom_call.1} parent=79 // loop_body
          %v123 = vld [vmem:[%s121] sm:%s114]
          %124 = vst [vmem:[%s122] sm:%s114] %v123
        $region85: #{tpu_custom_call.1} parent=79 // loop_footer
          %s120 = sadd.s32 1, %s116
        $region86: #{tpu_custom_call.1} parent=79 // loop_footer_branch
          %115 = sbr.rel target = $region82
        $region87: #{tpu_custom_call.1} parent=79 // loop_exit
          _
      $region80: #{tpu_custom_call.1} parent=64 // pred_fallthru
        _
    $region65: #{tpu_custom_call.1} parent=1 // pred_fallthru
      _
    // Predicated region
    $region66: #{tpu_custom_call.1} parent=1 // pred_check
      _
    $region67: #{tpu_custom_call.1} parent=1 // pred_check_branch
      %98 = sbr.rel (0) target = $region69
    $region68: #{tpu_custom_call.1} parent=1 // pred_region
      %s100 = ssub.s32 2, 1
      loop: start=0, step=1, limit=1
      $region70: #{tpu_custom_call.1} parent=68 // loop_pre_header
        _
      $region71: #{tpu_custom_call.1} parent=68 // loop_header
        %s102 = sphi 0, %s106
        %p103 = scmp.ge.s32.totalorder %s102, 1
        %s107 = sphi %s93, %s93
        %s108 = sphi %s94, %s94
      $region72: #{tpu_custom_call.1} parent=68 // loop_header_branch
        %105 = sbr.rel (%p103) target = $region76
      $region73: #{tpu_custom_call.1} parent=68 // loop_body
        %v109 = vld [vmem:[%s107] sm:%s100]
        %110 = vst [vmem:[%s108] sm:%s100] %v109
      $region74: #{tpu_custom_call.1} parent=68 // loop_footer
        %s106 = sadd.s32 1, %s102
      $region75: #{tpu_custom_call.1} parent=68 // loop_footer_branch
        %101 = sbr.rel target = $region71
      $region76: #{tpu_custom_call.1} parent=68 // loop_exit
        _
    $region69: #{tpu_custom_call.1} parent=1 // pred_fallthru
      _
    // Predicated region
    $region88: #{tpu_custom_call.1} parent=1 // pred_check
      _
    $region89: #{tpu_custom_call.1} parent=1 // pred_check_branch
      %127 = sbr.rel (0) target = $region91
    $region90: #{tpu_custom_call.1} parent=1 // pred_region
      %128 = vsyncadd [#allocation2], 16
    $region91: #{tpu_custom_call.1} parent=1 // pred_fallthru
      _
    %s129 = sadd.s32 %s16, 3
    %s130 = sld [smem:[#allocation4 + %s129]]
    %s131 = scalar_lea.vmem %s1, %s130
    %s132 = scalar_lea.vmem [#allocation5], 3
    // Predicated region
    $region92: #{tpu_custom_call.1} parent=1 // pred_check
      _
    $region93: #{tpu_custom_call.1} parent=1 // pred_check_branch
      %134 = sbr.rel target = $region95
    $region94: #{tpu_custom_call.1} parent=1 // pred_region
      // Predicated region
      $region107: #{tpu_custom_call.1} parent=94 // pred_check
        _
      $region108: #{tpu_custom_call.1} parent=94 // pred_check_branch
        %150 = sbr.rel (0) target = $region110
      $region109: #{tpu_custom_call.1} parent=94 // pred_region
        %s152 = ssub.s32 2, 1
        loop: start=0, step=1, limit=1
        $region111: #{tpu_custom_call.1} parent=109 // loop_pre_header
          _
        $region112: #{tpu_custom_call.1} parent=109 // loop_header
          %s154 = sphi 0, %s158
          %p155 = scmp.ge.s32.totalorder %s154, 1
          %s159 = sphi %s131, %s131
          %s160 = sphi %s132, %s132
        $region113: #{tpu_custom_call.1} parent=109 // loop_header_branch
          %157 = sbr.rel (%p155) target = $region117
        $region114: #{tpu_custom_call.1} parent=109 // loop_body
          %v161 = vld [vmem:[%s159] sm:%s152]
          %162 = vst [vmem:[%s160] sm:%s152] %v161
        $region115: #{tpu_custom_call.1} parent=109 // loop_footer
          %s158 = sadd.s32 1, %s154
        $region116: #{tpu_custom_call.1} parent=109 // loop_footer_branch
          %153 = sbr.rel target = $region112
        $region117: #{tpu_custom_call.1} parent=109 // loop_exit
          _
      $region110: #{tpu_custom_call.1} parent=94 // pred_fallthru
        _
    $region95: #{tpu_custom_call.1} parent=1 // pred_fallthru
      _
    // Predicated region
    $region96: #{tpu_custom_call.1} parent=1 // pred_check
      _
    $region97: #{tpu_custom_call.1} parent=1 // pred_check_branch
      %136 = sbr.rel (0) target = $region99
    $region98: #{tpu_custom_call.1} parent=1 // pred_region
      %s138 = ssub.s32 2, 1
      loop: start=0, step=1, limit=1
      $region100: #{tpu_custom_call.1} parent=98 // loop_pre_header
        _
      $region101: #{tpu_custom_call.1} parent=98 // loop_header
        %s140 = sphi 0, %s144
        %p141 = scmp.ge.s32.totalorder %s140, 1
        %s145 = sphi %s131, %s131
        %s146 = sphi %s132, %s132
      $region102: #{tpu_custom_call.1} parent=98 // loop_header_branch
        %143 = sbr.rel (%p141) target = $region106
      $region103: #{tpu_custom_call.1} parent=98 // loop_body
        %v147 = vld [vmem:[%s145] sm:%s138]
        %148 = vst [vmem:[%s146] sm:%s138] %v147
      $region104: #{tpu_custom_call.1} parent=98 // loop_footer
        %s144 = sadd.s32 1, %s140
      $region105: #{tpu_custom_call.1} parent=98 // loop_footer_branch
        %139 = sbr.rel target = $region101
      $region106: #{tpu_custom_call.1} parent=98 // loop_exit
        _
    $region99: #{tpu_custom_call.1} parent=1 // pred_fallthru
      _
    // Predicated region
    $region118: #{tpu_custom_call.1} parent=1 // pred_check
      _
    $region119: #{tpu_custom_call.1} parent=1 // pred_check_branch
      %165 = sbr.rel (0) target = $region121
    $region120: #{tpu_custom_call.1} parent=1 // pred_region
      %166 = vsyncadd [#allocation2], 16
    $region121: #{tpu_custom_call.1} parent=1 // pred_fallthru
      _
    %s167 = sadd.s32 %s16, 4
    %s168 = sld [smem:[#allocation4 + %s167]]
    %s169 = scalar_lea.vmem %s1, %s168
    %s170 = scalar_lea.vmem [#allocation5], 4
    // Predicated region
    $region122: #{tpu_custom_call.1} parent=1 // pred_check
      _
    $region123: #{tpu_custom_call.1} parent=1 // pred_check_branch
      %172 = sbr.rel target = $region125
    $region124: #{tpu_custom_call.1} parent=1 // pred_region
      // Predicated region
      $region137: #{tpu_custom_call.1} parent=124 // pred_check
        _
      $region138: #{tpu_custom_call.1} parent=124 // pred_check_branch
        %188 = sbr.rel (0) target = $region140
      $region139: #{tpu_custom_call.1} parent=124 // pred_region
        %s190 = ssub.s32 2, 1
        loop: start=0, step=1, limit=1
        $region141: #{tpu_custom_call.1} parent=139 // loop_pre_header
          _
        $region142: #{tpu_custom_call.1} parent=139 // loop_header
          %s192 = sphi 0, %s196
          %p193 = scmp.ge.s32.totalorder %s192, 1
          %s197 = sphi %s169, %s169
          %s198 = sphi %s170, %s170
        $region143: #{tpu_custom_call.1} parent=139 // loop_header_branch
          %195 = sbr.rel (%p193) target = $region147
        $region144: #{tpu_custom_call.1} parent=139 // loop_body
          %v199 = vld [vmem:[%s197] sm:%s190]
          %200 = vst [vmem:[%s198] sm:%s190] %v199
        $region145: #{tpu_custom_call.1} parent=139 // loop_footer
          %s196 = sadd.s32 1, %s192
        $region146: #{tpu_custom_call.1} parent=139 // loop_footer_branch
          %191 = sbr.rel target = $region142
        $region147: #{tpu_custom_call.1} parent=139 // loop_exit
          _
      $region140: #{tpu_custom_call.1} parent=124 // pred_fallthru
        _
    $region125: #{tpu_custom_call.1} parent=1 // pred_fallthru
      _
    // Predicated region
    $region126: #{tpu_custom_call.1} parent=1 // pred_check
      _
    $region127: #{tpu_custom_call.1} parent=1 // pred_check_branch
      %174 = sbr.rel (0) target = $region129
    $region128: #{tpu_custom_call.1} parent=1 // pred_region
      %s176 = ssub.s32 2, 1
      loop: start=0, step=1, limit=1
      $region130: #{tpu_custom_call.1} parent=128 // loop_pre_header
        _
      $region131: #{tpu_custom_call.1} parent=128 // loop_header
        %s178 = sphi 0, %s182
        %p179 = scmp.ge.s32.totalorder %s178, 1
        %s183 = sphi %s169, %s169
        %s184 = sphi %s170, %s170
      $region132: #{tpu_custom_call.1} parent=128 // loop_header_branch
        %181 = sbr.rel (%p179) target = $region136
      $region133: #{tpu_custom_call.1} parent=128 // loop_body
        %v185 = vld [vmem:[%s183] sm:%s176]
        %186 = vst [vmem:[%s184] sm:%s176] %v185
      $region134: #{tpu_custom_call.1} parent=128 // loop_footer
        %s182 = sadd.s32 1, %s178
      $region135: #{tpu_custom_call.1} parent=128 // loop_footer_branch
        %177 = sbr.rel target = $region131
      $region136: #{tpu_custom_call.1} parent=128 // loop_exit
        _
    $region129: #{tpu_custom_call.1} parent=1 // pred_fallthru
      _
    // Predicated region
    $region148: #{tpu_custom_call.1} parent=1 // pred_check
      _
    $region149: #{tpu_custom_call.1} parent=1 // pred_check_branch
      %203 = sbr.rel (0) target = $region151
    $region150: #{tpu_custom_call.1} parent=1 // pred_region
      %204 = vsyncadd [#allocation2], 16
    $region151: #{tpu_custom_call.1} parent=1 // pred_fallthru
      _
    %s205 = sadd.s32 %s16, 5
    %s206 = sld [smem:[#allocation4 + %s205]]
    %s207 = scalar_lea.vmem %s1, %s206
    %s208 = scalar_lea.vmem [#allocation5], 5
    // Predicated region
    $region152: #{tpu_custom_call.1} parent=1 // pred_check
      _
    $region153: #{tpu_custom_call.1} parent=1 // pred_check_branch
      %210 = sbr.rel target = $region155
    $region154: #{tpu_custom_call.1} parent=1 // pred_region
      // Predicated region
      $region167: #{tpu_custom_call.1} parent=154 // pred_check
        _
      $region168: #{tpu_custom_call.1} parent=154 // pred_check_branch
        %226 = sbr.rel (0) target = $region170
      $region169: #{tpu_custom_call.1} parent=154 // pred_region
        %s228 = ssub.s32 2, 1
        loop: start=0, step=1, limit=1
        $region171: #{tpu_custom_call.1} parent=169 // loop_pre_header
          _
        $region172: #{tpu_custom_call.1} parent=169 // loop_header
          %s230 = sphi 0, %s234
          %p231 = scmp.ge.s32.totalorder %s230, 1
          %s235 = sphi %s207, %s207
          %s236 = sphi %s208, %s208
        $region173: #{tpu_custom_call.1} parent=169 // loop_header_branch
          %233 = sbr.rel (%p231) target = $region177
        $region174: #{tpu_custom_call.1} parent=169 // loop_body
          %v237 = vld [vmem:[%s235] sm:%s228]
          %238 = vst [vmem:[%s236] sm:%s228] %v237
        $region175: #{tpu_custom_call.1} parent=169 // loop_footer
          %s234 = sadd.s32 1, %s230
        $region176: #{tpu_custom_call.1} parent=169 // loop_footer_branch
          %229 = sbr.rel target = $region172
        $region177: #{tpu_custom_call.1} parent=169 // loop_exit
          _
      $region170: #{tpu_custom_call.1} parent=154 // pred_fallthru
        _
    $region155: #{tpu_custom_call.1} parent=1 // pred_fallthru
      _
    // Predicated region
    $region156: #{tpu_custom_call.1} parent=1 // pred_check
      _
    $region157: #{tpu_custom_call.1} parent=1 // pred_check_branch
      %212 = sbr.rel (0) target = $region159
    $region158: #{tpu_custom_call.1} parent=1 // pred_region
      %s214 = ssub.s32 2, 1
      loop: start=0, step=1, limit=1
      $region160: #{tpu_custom_call.1} parent=158 // loop_pre_header
        _
      $region161: #{tpu_custom_call.1} parent=158 // loop_header
        %s216 = sphi 0, %s220
        %p217 = scmp.ge.s32.totalorder %s216, 1
        %s221 = sphi %s207, %s207
        %s222 = sphi %s208, %s208
      $region162: #{tpu_custom_call.1} parent=158 // loop_header_branch
        %219 = sbr.rel (%p217) target = $region166
      $region163: #{tpu_custom_call.1} parent=158 // loop_body
        %v223 = vld [vmem:[%s221] sm:%s214]
        %224 = vst [vmem:[%s222] sm:%s214] %v223
      $region164: #{tpu_custom_call.1} parent=158 // loop_footer
        %s220 = sadd.s32 1, %s216
      $region165: #{tpu_custom_call.1} parent=158 // loop_footer_branch
        %215 = sbr.rel target = $region161
      $region166: #{tpu_custom_call.1} parent=158 // loop_exit
        _
    $region159: #{tpu_custom_call.1} parent=1 // pred_fallthru
      _
    // Predicated region
    $region178: #{tpu_custom_call.1} parent=1 // pred_check
      _
    $region179: #{tpu_custom_call.1} parent=1 // pred_check_branch
      %241 = sbr.rel (0) target = $region181
    $region180: #{tpu_custom_call.1} parent=1 // pred_region
      %242 = vsyncadd [#allocation2], 16
    $region181: #{tpu_custom_call.1} parent=1 // pred_fallthru
      _
    %s243 = sadd.s32 %s16, 6
    %s244 = sld [smem:[#allocation4 + %s243]]
    %s245 = scalar_lea.vmem %s1, %s244
    %s246 = scalar_lea.vmem [#allocation5], 6
    // Predicated region
    $region182: #{tpu_custom_call.1} parent=1 // pred_check
      _
    $region183: #{tpu_custom_call.1} parent=1 // pred_check_branch
      %248 = sbr.rel target = $region185
    $region184: #{tpu_custom_call.1} parent=1 // pred_region
      // Predicated region
      $region197: #{tpu_custom_call.1} parent=184 // pred_check
        _
      $region198: #{tpu_custom_call.1} parent=184 // pred_check_branch
        %264 = sbr.rel (0) target = $region200
      $region199: #{tpu_custom_call.1} parent=184 // pred_region
        %s266 = ssub.s32 2, 1
        loop: start=0, step=1, limit=1
        $region201: #{tpu_custom_call.1} parent=199 // loop_pre_header
          _
        $region202: #{tpu_custom_call.1} parent=199 // loop_header
          %s268 = sphi 0, %s272
          %p269 = scmp.ge.s32.totalorder %s268, 1
          %s273 = sphi %s245, %s245
          %s274 = sphi %s246, %s246
        $region203: #{tpu_custom_call.1} parent=199 // loop_header_branch
          %271 = sbr.rel (%p269) target = $region207
        $region204: #{tpu_custom_call.1} parent=199 // loop_body
          %v275 = vld [vmem:[%s273] sm:%s266]
          %276 = vst [vmem:[%s274] sm:%s266] %v275
        $region205: #{tpu_custom_call.1} parent=199 // loop_footer
          %s272 = sadd.s32 1, %s268
        $region206: #{tpu_custom_call.1} parent=199 // loop_footer_branch
          %267 = sbr.rel target = $region202
        $region207: #{tpu_custom_call.1} parent=199 // loop_exit
          _
      $region200: #{tpu_custom_call.1} parent=184 // pred_fallthru
        _
    $region185: #{tpu_custom_call.1} parent=1 // pred_fallthru
      _
    // Predicated region
    $region186: #{tpu_custom_call.1} parent=1 // pred_check
      _
    $region187: #{tpu_custom_call.1} parent=1 // pred_check_branch
      %250 = sbr.rel (0) target = $region189
    $region188: #{tpu_custom_call.1} parent=1 // pred_region
      %s252 = ssub.s32 2, 1
      loop: start=0, step=1, limit=1
      $region190: #{tpu_custom_call.1} parent=188 // loop_pre_header
        _
      $region191: #{tpu_custom_call.1} parent=188 // loop_header
        %s254 = sphi 0, %s258
        %p255 = scmp.ge.s32.totalorder %s254, 1
        %s259 = sphi %s245, %s245
        %s260 = sphi %s246, %s246
      $region192: #{tpu_custom_call.1} parent=188 // loop_header_branch
        %257 = sbr.rel (%p255) target = $region196
      $region193: #{tpu_custom_call.1} parent=188 // loop_body
        %v261 = vld [vmem:[%s259] sm:%s252]
        %262 = vst [vmem:[%s260] sm:%s252] %v261
      $region194: #{tpu_custom_call.1} parent=188 // loop_footer
        %s258 = sadd.s32 1, %s254
      $region195: #{tpu_custom_call.1} parent=188 // loop_footer_branch
        %253 = sbr.rel target = $region191
      $region196: #{tpu_custom_call.1} parent=188 // loop_exit
        _
    $region189: #{tpu_custom_call.1} parent=1 // pred_fallthru
      _
    // Predicated region
    $region208: #{tpu_custom_call.1} parent=1 // pred_check
      _
    $region209: #{tpu_custom_call.1} parent=1 // pred_check_branch
      %279 = sbr.rel (0) target = $region211
    $region210: #{tpu_custom_call.1} parent=1 // pred_region
      %280 = vsyncadd [#allocation2], 16
    $region211: #{tpu_custom_call.1} parent=1 // pred_fallthru
      _
    %s281 = sadd.s32 %s16, 7
    %s282 = sld [smem:[#allocation4 + %s281]]
    %s283 = scalar_lea.vmem %s1, %s282
    %s284 = scalar_lea.vmem [#allocation5], 7
    // Predicated region
    $region212: #{tpu_custom_call.1} parent=1 // pred_check
      _
    $region213: #{tpu_custom_call.1} parent=1 // pred_check_branch
      %286 = sbr.rel target = $region215
    $region214: #{tpu_custom_call.1} parent=1 // pred_region
      // Predicated region
      $region227: #{tpu_custom_call.1} parent=214 // pred_check
        _
      $region228: #{tpu_custom_call.1} parent=214 // pred_check_branch
        %302 = sbr.rel (0) target = $region230
      $region229: #{tpu_custom_call.1} parent=214 // pred_region
        %s304 = ssub.s32 2, 1
        loop: start=0, step=1, limit=1
        $region231: #{tpu_custom_call.1} parent=229 // loop_pre_header
          _
        $region232: #{tpu_custom_call.1} parent=229 // loop_header
          %s306 = sphi 0, %s310
          %p307 = scmp.ge.s32.totalorder %s306, 1
          %s311 = sphi %s283, %s283
          %s312 = sphi %s284, %s284
        $region233: #{tpu_custom_call.1} parent=229 // loop_header_branch
          %309 = sbr.rel (%p307) target = $region237
        $region234: #{tpu_custom_call.1} parent=229 // loop_body
          %v313 = vld [vmem:[%s311] sm:%s304]
          %314 = vst [vmem:[%s312] sm:%s304] %v313
        $region235: #{tpu_custom_call.1} parent=229 // loop_footer
          %s310 = sadd.s32 1, %s306
        $region236: #{tpu_custom_call.1} parent=229 // loop_footer_branch
          %305 = sbr.rel target = $region232
        $region237: #{tpu_custom_call.1} parent=229 // loop_exit
          _
      $region230: #{tpu_custom_call.1} parent=214 // pred_fallthru
        _
    $region215: #{tpu_custom_call.1} parent=1 // pred_fallthru
      _
    // Predicated region
    $region216: #{tpu_custom_call.1} parent=1 // pred_check
      _
    $region217: #{tpu_custom_call.1} parent=1 // pred_check_branch
      %288 = sbr.rel (0) target = $region219
    $region218: #{tpu_custom_call.1} parent=1 // pred_region
      %s290 = ssub.s32 2, 1
      loop: start=0, step=1, limit=1
      $region220: #{tpu_custom_call.1} parent=218 // loop_pre_header
        _
      $region221: #{tpu_custom_call.1} parent=218 // loop_header
        %s292 = sphi 0, %s296
        %p293 = scmp.ge.s32.totalorder %s292, 1
        %s297 = sphi %s283, %s283
        %s298 = sphi %s284, %s284
      $region222: #{tpu_custom_call.1} parent=218 // loop_header_branch
        %295 = sbr.rel (%p293) target = $region226
      $region223: #{tpu_custom_call.1} parent=218 // loop_body
        %v299 = vld [vmem:[%s297] sm:%s290]
        %300 = vst [vmem:[%s298] sm:%s290] %v299
      $region224: #{tpu_custom_call.1} parent=218 // loop_footer
        %s296 = sadd.s32 1, %s292
      $region225: #{tpu_custom_call.1} parent=218 // loop_footer_branch
        %291 = sbr.rel target = $region221
      $region226: #{tpu_custom_call.1} parent=218 // loop_exit
        _
    $region219: #{tpu_custom_call.1} parent=1 // pred_fallthru
      _
    // Predicated region
    $region238: #{tpu_custom_call.1} parent=1 // pred_check
      _
    $region239: #{tpu_custom_call.1} parent=1 // pred_check_branch
      %317 = sbr.rel (0) target = $region241
    $region240: #{tpu_custom_call.1} parent=1 // pred_region
      %318 = vsyncadd [#allocation2], 16
    $region241: #{tpu_custom_call.1} parent=1 // pred_fallthru
      _
    %s319 = sadd.s32 %s16, 8
    %s320 = sld [smem:[#allocation4 + %s319]]
    %s321 = scalar_lea.vmem %s1, %s320
    %s322 = scalar_lea.vmem [#allocation5], 8
    // Predicated region
    $region242: #{tpu_custom_call.1} parent=1 // pred_check
      _
    $region243: #{tpu_custom_call.1} parent=1 // pred_check_branch
      %324 = sbr.rel target = $region245
    $region244: #{tpu_custom_call.1} parent=1 // pred_region
      // Predicated region
      $region257: #{tpu_custom_call.1} parent=244 // pred_check
        _
      $region258: #{tpu_custom_call.1} parent=244 // pred_check_branch
        %340 = sbr.rel (0) target = $region260
      $region259: #{tpu_custom_call.1} parent=244 // pred_region
        %s342 = ssub.s32 2, 1
        loop: start=0, step=1, limit=1
        $region261: #{tpu_custom_call.1} parent=259 // loop_pre_header
          _
        $region262: #{tpu_custom_call.1} parent=259 // loop_header
          %s344 = sphi 0, %s348
          %p345 = scmp.ge.s32.totalorder %s344, 1
          %s349 = sphi %s321, %s321
          %s350 = sphi %s322, %s322
        $region263: #{tpu_custom_call.1} parent=259 // loop_header_branch
          %347 = sbr.rel (%p345) target = $region267
        $region264: #{tpu_custom_call.1} parent=259 // loop_body
          %v351 = vld [vmem:[%s349] sm:%s342]
          %352 = vst [vmem:[%s350] sm:%s342] %v351
        $region265: #{tpu_custom_call.1} parent=259 // loop_footer
          %s348 = sadd.s32 1, %s344
        $region266: #{tpu_custom_call.1} parent=259 // loop_footer_branch
          %343 = sbr.rel target = $region262
        $region267: #{tpu_custom_call.1} parent=259 // loop_exit
          _
      $region260: #{tpu_custom_call.1} parent=244 // pred_fallthru
        _
    $region245: #{tpu_custom_call.1} parent=1 // pred_fallthru
      _
    // Predicated region
    $region246: #{tpu_custom_call.1} parent=1 // pred_check
      _
    $region247: #{tpu_custom_call.1} parent=1 // pred_check_branch
      %326 = sbr.rel (0) target = $region249
    $region248: #{tpu_custom_call.1} parent=1 // pred_region
      %s328 = ssub.s32 2, 1
      loop: start=0, step=1, limit=1
      $region250: #{tpu_custom_call.1} parent=248 // loop_pre_header
        _
      $region251: #{tpu_custom_call.1} parent=248 // loop_header
        %s330 = sphi 0, %s334
        %p331 = scmp.ge.s32.totalorder %s330, 1
        %s335 = sphi %s321, %s321
        %s336 = sphi %s322, %s322
      $region252: #{tpu_custom_call.1} parent=248 // loop_header_branch
        %333 = sbr.rel (%p331) target = $region256
      $region253: #{tpu_custom_call.1} parent=248 // loop_body
        %v337 = vld [vmem:[%s335] sm:%s328]
        %338 = vst [vmem:[%s336] sm:%s328] %v337
      $region254: #{tpu_custom_call.1} parent=248 // loop_footer
        %s334 = sadd.s32 1, %s330
      $region255: #{tpu_custom_call.1} parent=248 // loop_footer_branch
        %329 = sbr.rel target = $region251
      $region256: #{tpu_custom_call.1} parent=248 // loop_exit
        _
    $region249: #{tpu_custom_call.1} parent=1 // pred_fallthru
      _
    // Predicated region
    $region268: #{tpu_custom_call.1} parent=1 // pred_check
      _
    $region269: #{tpu_custom_call.1} parent=1 // pred_check_branch
      %355 = sbr.rel (0) target = $region271
    $region270: #{tpu_custom_call.1} parent=1 // pred_region
      %356 = vsyncadd [#allocation2], 16
    $region271: #{tpu_custom_call.1} parent=1 // pred_fallthru
      _
    %s357 = sadd.s32 %s16, 9
    %s358 = sld [smem:[#allocation4 + %s357]]
    %s359 = scalar_lea.vmem %s1, %s358
    %s360 = scalar_lea.vmem [#allocation5], 9
    // Predicated region
    $region272: #{tpu_custom_call.1} parent=1 // pred_check
      _
    $region273: #{tpu_custom_call.1} parent=1 // pred_check_branch
      %362 = sbr.rel target = $region275
    $region274: #{tpu_custom_call.1} parent=1 // pred_region
      // Predicated region
      $region287: #{tpu_custom_call.1} parent=274 // pred_check
        _
      $region288: #{tpu_custom_call.1} parent=274 // pred_check_branch
        %378 = sbr.rel (0) target = $region290
      $region289: #{tpu_custom_call.1} parent=274 // pred_region
        %s380 = ssub.s32 2, 1
        loop: start=0, step=1, limit=1
        $region291: #{tpu_custom_call.1} parent=289 // loop_pre_header
          _
        $region292: #{tpu_custom_call.1} parent=289 // loop_header
          %s382 = sphi 0, %s386
          %p383 = scmp.ge.s32.totalorder %s382, 1
          %s387 = sphi %s359, %s359
          %s388 = sphi %s360, %s360
        $region293: #{tpu_custom_call.1} parent=289 // loop_header_branch
          %385 = sbr.rel (%p383) target = $region297
        $region294: #{tpu_custom_call.1} parent=289 // loop_body
          %v389 = vld [vmem:[%s387] sm:%s380]
          %390 = vst [vmem:[%s388] sm:%s380] %v389
        $region295: #{tpu_custom_call.1} parent=289 // loop_footer
          %s386 = sadd.s32 1, %s382
        $region296: #{tpu_custom_call.1} parent=289 // loop_footer_branch
          %381 = sbr.rel target = $region292
        $region297: #{tpu_custom_call.1} parent=289 // loop_exit
          _
      $region290: #{tpu_custom_call.1} parent=274 // pred_fallthru
        _
    $region275: #{tpu_custom_call.1} parent=1 // pred_fallthru
      _
    // Predicated region
    $region276: #{tpu_custom_call.1} parent=1 // pred_check
      _
    $region277: #{tpu_custom_call.1} parent=1 // pred_check_branch
      %364 = sbr.rel (0) target = $region279
    $region278: #{tpu_custom_call.1} parent=1 // pred_region
      %s366 = ssub.s32 2, 1
      loop: start=0, step=1, limit=1
      $region280: #{tpu_custom_call.1} parent=278 // loop_pre_header
        _
      $region281: #{tpu_custom_call.1} parent=278 // loop_header
        %s368 = sphi 0, %s372
        %p369 = scmp.ge.s32.totalorder %s368, 1
        %s373 = sphi %s359, %s359
        %s374 = sphi %s360, %s360
      $region282: #{tpu_custom_call.1} parent=278 // loop_header_branch
        %371 = sbr.rel (%p369) target = $region286
      $region283: #{tpu_custom_call.1} parent=278 // loop_body
        %v375 = vld [vmem:[%s373] sm:%s366]
        %376 = vst [vmem:[%s374] sm:%s366] %v375
      $region284: #{tpu_custom_call.1} parent=278 // loop_footer
        %s372 = sadd.s32 1, %s368
      $region285: #{tpu_custom_call.1} parent=278 // loop_footer_branch
        %367 = sbr.rel target = $region281
      $region286: #{tpu_custom_call.1} parent=278 // loop_exit
        _
    $region279: #{tpu_custom_call.1} parent=1 // pred_fallthru
      _
    // Predicated region
    $region298: #{tpu_custom_call.1} parent=1 // pred_check
      _
    $region299: #{tpu_custom_call.1} parent=1 // pred_check_branch
      %393 = sbr.rel (0) target = $region301
    $region300: #{tpu_custom_call.1} parent=1 // pred_region
      %394 = vsyncadd [#allocation2], 16
    $region301: #{tpu_custom_call.1} parent=1 // pred_fallthru
      _
    %s395 = sadd.s32 %s16, 10
    %s396 = sld [smem:[#allocation4 + %s395]]
    %s397 = scalar_lea.vmem %s1, %s396
    %s398 = scalar_lea.vmem [#allocation5], 10
    // Predicated region
    $region302: #{tpu_custom_call.1} parent=1 // pred_check
      _
    $region303: #{tpu_custom_call.1} parent=1 // pred_check_branch
      %400 = sbr.rel target = $region305
    $region304: #{tpu_custom_call.1} parent=1 // pred_region
      // Predicated region
      $region317: #{tpu_custom_call.1} parent=304 // pred_check
        _
      $region318: #{tpu_custom_call.1} parent=304 // pred_check_branch
        %416 = sbr.rel (0) target = $region320
      $region319: #{tpu_custom_call.1} parent=304 // pred_region
        %s418 = ssub.s32 2, 1
        loop: start=0, step=1, limit=1
        $region321: #{tpu_custom_call.1} parent=319 // loop_pre_header
          _
        $region322: #{tpu_custom_call.1} parent=319 // loop_header
          %s420 = sphi 0, %s424
          %p421 = scmp.ge.s32.totalorder %s420, 1
          %s425 = sphi %s397, %s397
          %s426 = sphi %s398, %s398
        $region323: #{tpu_custom_call.1} parent=319 // loop_header_branch
          %423 = sbr.rel (%p421) target = $region327
        $region324: #{tpu_custom_call.1} parent=319 // loop_body
          %v427 = vld [vmem:[%s425] sm:%s418]
          %428 = vst [vmem:[%s426] sm:%s418] %v427
        $region325: #{tpu_custom_call.1} parent=319 // loop_footer
          %s424 = sadd.s32 1, %s420
        $region326: #{tpu_custom_call.1} parent=319 // loop_footer_branch
          %419 = sbr.rel target = $region322
        $region327: #{tpu_custom_call.1} parent=319 // loop_exit
          _
      $region320: #{tpu_custom_call.1} parent=304 // pred_fallthru
        _
    $region305: #{tpu_custom_call.1} parent=1 // pred_fallthru
      _
    // Predicated region
    $region306: #{tpu_custom_call.1} parent=1 // pred_check
      _
    $region307: #{tpu_custom_call.1} parent=1 // pred_check_branch
      %402 = sbr.rel (0) target = $region309
    $region308: #{tpu_custom_call.1} parent=1 // pred_region
      %s404 = ssub.s32 2, 1
      loop: start=0, step=1, limit=1
      $region310: #{tpu_custom_call.1} parent=308 // loop_pre_header
        _
      $region311: #{tpu_custom_call.1} parent=308 // loop_header
        %s406 = sphi 0, %s410
        %p407 = scmp.ge.s32.totalorder %s406, 1
        %s411 = sphi %s397, %s397
        %s412 = sphi %s398, %s398
      $region312: #{tpu_custom_call.1} parent=308 // loop_header_branch
        %409 = sbr.rel (%p407) target = $region316
      $region313: #{tpu_custom_call.1} parent=308 // loop_body
        %v413 = vld [vmem:[%s411] sm:%s404]
        %414 = vst [vmem:[%s412] sm:%s404] %v413
      $region314: #{tpu_custom_call.1} parent=308 // loop_footer
        %s410 = sadd.s32 1, %s406
      $region315: #{tpu_custom_call.1} parent=308 // loop_footer_branch
        %405 = sbr.rel target = $region311
      $region316: #{tpu_custom_call.1} parent=308 // loop_exit
        _
    $region309: #{tpu_custom_call.1} parent=1 // pred_fallthru
      _
    // Predicated region
    $region328: #{tpu_custom_call.1} parent=1 // pred_check
      _
    $region329: #{tpu_custom_call.1} parent=1 // pred_check_branch
      %431 = sbr.rel (0) target = $region331
    $region330: #{tpu_custom_call.1} parent=1 // pred_region
      %432 = vsyncadd [#allocation2], 16
    $region331: #{tpu_custom_call.1} parent=1 // pred_fallthru
      _
    %s433 = sadd.s32 %s16, 11
    %s434 = sld [smem:[#allocation4 + %s433]]
    %s435 = scalar_lea.vmem %s1, %s434
    %s436 = scalar_lea.vmem [#allocation5], 11
    // Predicated region
    $region332: #{tpu_custom_call.1} parent=1 // pred_check
      _
    $region333: #{tpu_custom_call.1} parent=1 // pred_check_branch
      %438 = sbr.rel target = $region335
    $region334: #{tpu_custom_call.1} parent=1 // pred_region
      // Predicated region
      $region347: #{tpu_custom_call.1} parent=334 // pred_check
        _
      $region348: #{tpu_custom_call.1} parent=334 // pred_check_branch
        %454 = sbr.rel (0) target = $region350
      $region349: #{tpu_custom_call.1} parent=334 // pred_region
        %s456 = ssub.s32 2, 1
        loop: start=0, step=1, limit=1
        $region351: #{tpu_custom_call.1} parent=349 // loop_pre_header
          _
        $region352: #{tpu_custom_call.1} parent=349 // loop_header
          %s458 = sphi 0, %s462
          %p459 = scmp.ge.s32.totalorder %s458, 1
          %s463 = sphi %s435, %s435
          %s464 = sphi %s436, %s436
        $region353: #{tpu_custom_call.1} parent=349 // loop_header_branch
          %461 = sbr.rel (%p459) target = $region357
        $region354: #{tpu_custom_call.1} parent=349 // loop_body
          %v465 = vld [vmem:[%s463] sm:%s456]
          %466 = vst [vmem:[%s464] sm:%s456] %v465
        $region355: #{tpu_custom_call.1} parent=349 // loop_footer
          %s462 = sadd.s32 1, %s458
        $region356: #{tpu_custom_call.1} parent=349 // loop_footer_branch
          %457 = sbr.rel target = $region352
        $region357: #{tpu_custom_call.1} parent=349 // loop_exit
          _
      $region350: #{tpu_custom_call.1} parent=334 // pred_fallthru
        _
    $region335: #{tpu_custom_call.1} parent=1 // pred_fallthru
      _
    // Predicated region
    $region336: #{tpu_custom_call.1} parent=1 // pred_check
      _
    $region337: #{tpu_custom_call.1} parent=1 // pred_check_branch
      %440 = sbr.rel (0) target = $region339
    $region338: #{tpu_custom_call.1} parent=1 // pred_region
      %s442 = ssub.s32 2, 1
      loop: start=0, step=1, limit=1
      $region340: #{tpu_custom_call.1} parent=338 // loop_pre_header
        _
      $region341: #{tpu_custom_call.1} parent=338 // loop_header
        %s444 = sphi 0, %s448
        %p445 = scmp.ge.s32.totalorder %s444, 1
        %s449 = sphi %s435, %s435
        %s450 = sphi %s436, %s436
      $region342: #{tpu_custom_call.1} parent=338 // loop_header_branch
        %447 = sbr.rel (%p445) target = $region346
      $region343: #{tpu_custom_call.1} parent=338 // loop_body
        %v451 = vld [vmem:[%s449] sm:%s442]
        %452 = vst [vmem:[%s450] sm:%s442] %v451
      $region344: #{tpu_custom_call.1} parent=338 // loop_footer
        %s448 = sadd.s32 1, %s444
      $region345: #{tpu_custom_call.1} parent=338 // loop_footer_branch
        %443 = sbr.rel target = $region341
      $region346: #{tpu_custom_call.1} parent=338 // loop_exit
        _
    $region339: #{tpu_custom_call.1} parent=1 // pred_fallthru
      _
    // Predicated region
    $region358: #{tpu_custom_call.1} parent=1 // pred_check
      _
    $region359: #{tpu_custom_call.1} parent=1 // pred_check_branch
      %469 = sbr.rel (0) target = $region361
    $region360: #{tpu_custom_call.1} parent=1 // pred_region
      %470 = vsyncadd [#allocation2], 16
    $region361: #{tpu_custom_call.1} parent=1 // pred_fallthru
      _
    %s471 = sadd.s32 %s16, 12
    %s472 = sld [smem:[#allocation4 + %s471]]
    %s473 = scalar_lea.vmem %s1, %s472
    %s474 = scalar_lea.vmem [#allocation5], 12
    // Predicated region
    $region362: #{tpu_custom_call.1} parent=1 // pred_check
      _
    $region363: #{tpu_custom_call.1} parent=1 // pred_check_branch
      %476 = sbr.rel target = $region365
    $region364: #{tpu_custom_call.1} parent=1 // pred_region
      // Predicated region
      $region377: #{tpu_custom_call.1} parent=364 // pred_check
        _
      $region378: #{tpu_custom_call.1} parent=364 // pred_check_branch
        %492 = sbr.rel (0) target = $region380
      $region379: #{tpu_custom_call.1} parent=364 // pred_region
        %s494 = ssub.s32 2, 1
        loop: start=0, step=1, limit=1
        $region381: #{tpu_custom_call.1} parent=379 // loop_pre_header
          _
        $region382: #{tpu_custom_call.1} parent=379 // loop_header
          %s496 = sphi 0, %s500
          %p497 = scmp.ge.s32.totalorder %s496, 1
          %s501 = sphi %s473, %s473
          %s502 = sphi %s474, %s474
        $region383: #{tpu_custom_call.1} parent=379 // loop_header_branch
          %499 = sbr.rel (%p497) target = $region387
        $region384: #{tpu_custom_call.1} parent=379 // loop_body
          %v503 = vld [vmem:[%s501] sm:%s494]
          %504 = vst [vmem:[%s502] sm:%s494] %v503
        $region385: #{tpu_custom_call.1} parent=379 // loop_footer
          %s500 = sadd.s32 1, %s496
        $region386: #{tpu_custom_call.1} parent=379 // loop_footer_branch
          %495 = sbr.rel target = $region382
        $region387: #{tpu_custom_call.1} parent=379 // loop_exit
          _
      $region380: #{tpu_custom_call.1} parent=364 // pred_fallthru
        _
    $region365: #{tpu_custom_call.1} parent=1 // pred_fallthru
      _
    // Predicated region
    $region366: #{tpu_custom_call.1} parent=1 // pred_check
      _
    $region367: #{tpu_custom_call.1} parent=1 // pred_check_branch
      %478 = sbr.rel (0) target = $region369
    $region368: #{tpu_custom_call.1} parent=1 // pred_region
      %s480 = ssub.s32 2, 1
      loop: start=0, step=1, limit=1
      $region370: #{tpu_custom_call.1} parent=368 // loop_pre_header
        _
      $region371: #{tpu_custom_call.1} parent=368 // loop_header
        %s482 = sphi 0, %s486
        %p483 = scmp.ge.s32.totalorder %s482, 1
        %s487 = sphi %s473, %s473
        %s488 = sphi %s474, %s474
      $region372: #{tpu_custom_call.1} parent=368 // loop_header_branch
        %485 = sbr.rel (%p483) target = $region376
      $region373: #{tpu_custom_call.1} parent=368 // loop_body
        %v489 = vld [vmem:[%s487] sm:%s480]
        %490 = vst [vmem:[%s488] sm:%s480] %v489
      $region374: #{tpu_custom_call.1} parent=368 // loop_footer
        %s486 = sadd.s32 1, %s482
      $region375: #{tpu_custom_call.1} parent=368 // loop_footer_branch
        %481 = sbr.rel target = $region371
      $region376: #{tpu_custom_call.1} parent=368 // loop_exit
        _
    $region369: #{tpu_custom_call.1} parent=1 // pred_fallthru
      _
    // Predicated region
    $region388: #{tpu_custom_call.1} parent=1 // pred_check
      _
    $region389: #{tpu_custom_call.1} parent=1 // pred_check_branch
      %507 = sbr.rel (0) target = $region391
    $region390: #{tpu_custom_call.1} parent=1 // pred_region
      %508 = vsyncadd [#allocation2], 16
    $region391: #{tpu_custom_call.1} parent=1 // pred_fallthru
      _
    %s509 = sadd.s32 %s16, 13
    %s510 = sld [smem:[#allocation4 + %s509]]
    %s511 = scalar_lea.vmem %s1, %s510
    %s512 = scalar_lea.vmem [#allocation5], 13
    // Predicated region
    $region392: #{tpu_custom_call.1} parent=1 // pred_check
      _
    $region393: #{tpu_custom_call.1} parent=1 // pred_check_branch
      %514 = sbr.rel target = $region395
    $region394: #{tpu_custom_call.1} parent=1 // pred_region
      // Predicated region
      $region407: #{tpu_custom_call.1} parent=394 // pred_check
        _
      $region408: #{tpu_custom_call.1} parent=394 // pred_check_branch
        %530 = sbr.rel (0) target = $region410
      $region409: #{tpu_custom_call.1} parent=394 // pred_region
        %s532 = ssub.s32 2, 1
        loop: start=0, step=1, limit=1
        $region411: #{tpu_custom_call.1} parent=409 // loop_pre_header
          _
        $region412: #{tpu_custom_call.1} parent=409 // loop_header
          %s534 = sphi 0, %s538
          %p535 = scmp.ge.s32.totalorder %s534, 1
          %s539 = sphi %s511, %s511
          %s540 = sphi %s512, %s512
        $region413: #{tpu_custom_call.1} parent=409 // loop_header_branch
          %537 = sbr.rel (%p535) target = $region417
        $region414: #{tpu_custom_call.1} parent=409 // loop_body
          %v541 = vld [vmem:[%s539] sm:%s532]
          %542 = vst [vmem:[%s540] sm:%s532] %v541
        $region415: #{tpu_custom_call.1} parent=409 // loop_footer
          %s538 = sadd.s32 1, %s534
        $region416: #{tpu_custom_call.1} parent=409 // loop_footer_branch
          %533 = sbr.rel target = $region412
        $region417: #{tpu_custom_call.1} parent=409 // loop_exit
          _
      $region410: #{tpu_custom_call.1} parent=394 // pred_fallthru
        _
    $region395: #{tpu_custom_call.1} parent=1 // pred_fallthru
      _
    // Predicated region
    $region396: #{tpu_custom_call.1} parent=1 // pred_check
      _
    $region397: #{tpu_custom_call.1} parent=1 // pred_check_branch
      %516 = sbr.rel (0) target = $region399
    $region398: #{tpu_custom_call.1} parent=1 // pred_region
      %s518 = ssub.s32 2, 1
      loop: start=0, step=1, limit=1
      $region400: #{tpu_custom_call.1} parent=398 // loop_pre_header
        _
      $region401: #{tpu_custom_call.1} parent=398 // loop_header
        %s520 = sphi 0, %s524
        %p521 = scmp.ge.s32.totalorder %s520, 1
        %s525 = sphi %s511, %s511
        %s526 = sphi %s512, %s512
      $region402: #{tpu_custom_call.1} parent=398 // loop_header_branch
        %523 = sbr.rel (%p521) target = $region406
      $region403: #{tpu_custom_call.1} parent=398 // loop_body
        %v527 = vld [vmem:[%s525] sm:%s518]
        %528 = vst [vmem:[%s526] sm:%s518] %v527
      $region404: #{tpu_custom_call.1} parent=398 // loop_footer
        %s524 = sadd.s32 1, %s520
      $region405: #{tpu_custom_call.1} parent=398 // loop_footer_branch
        %519 = sbr.rel target = $region401
      $region406: #{tpu_custom_call.1} parent=398 // loop_exit
        _
    $region399: #{tpu_custom_call.1} parent=1 // pred_fallthru
      _
    // Predicated region
    $region418: #{tpu_custom_call.1} parent=1 // pred_check
      _
    $region419: #{tpu_custom_call.1} parent=1 // pred_check_branch
      %545 = sbr.rel (0) target = $region421
    $region420: #{tpu_custom_call.1} parent=1 // pred_region
      %546 = vsyncadd [#allocation2], 16
    $region421: #{tpu_custom_call.1} parent=1 // pred_fallthru
      _
    %s547 = sadd.s32 %s16, 14
    %s548 = sld [smem:[#allocation4 + %s547]]
    %s549 = scalar_lea.vmem %s1, %s548
    %s550 = scalar_lea.vmem [#allocation5], 14
    // Predicated region
    $region422: #{tpu_custom_call.1} parent=1 // pred_check
      _
    $region423: #{tpu_custom_call.1} parent=1 // pred_check_branch
      %552 = sbr.rel target = $region425
    $region424: #{tpu_custom_call.1} parent=1 // pred_region
      // Predicated region
      $region437: #{tpu_custom_call.1} parent=424 // pred_check
        _
      $region438: #{tpu_custom_call.1} parent=424 // pred_check_branch
        %568 = sbr.rel (0) target = $region440
      $region439: #{tpu_custom_call.1} parent=424 // pred_region
        %s570 = ssub.s32 2, 1
        loop: start=0, step=1, limit=1
        $region441: #{tpu_custom_call.1} parent=439 // loop_pre_header
          _
        $region442: #{tpu_custom_call.1} parent=439 // loop_header
          %s572 = sphi 0, %s576
          %p573 = scmp.ge.s32.totalorder %s572, 1
          %s577 = sphi %s549, %s549
          %s578 = sphi %s550, %s550
        $region443: #{tpu_custom_call.1} parent=439 // loop_header_branch
          %575 = sbr.rel (%p573) target = $region447
        $region444: #{tpu_custom_call.1} parent=439 // loop_body
          %v579 = vld [vmem:[%s577] sm:%s570]
          %580 = vst [vmem:[%s578] sm:%s570] %v579
        $region445: #{tpu_custom_call.1} parent=439 // loop_footer
          %s576 = sadd.s32 1, %s572
        $region446: #{tpu_custom_call.1} parent=439 // loop_footer_branch
          %571 = sbr.rel target = $region442
        $region447: #{tpu_custom_call.1} parent=439 // loop_exit
          _
      $region440: #{tpu_custom_call.1} parent=424 // pred_fallthru
        _
    $region425: #{tpu_custom_call.1} parent=1 // pred_fallthru
      _
    // Predicated region
    $region426: #{tpu_custom_call.1} parent=1 // pred_check
      _
    $region427: #{tpu_custom_call.1} parent=1 // pred_check_branch
      %554 = sbr.rel (0) target = $region429
    $region428: #{tpu_custom_call.1} parent=1 // pred_region
      %s556 = ssub.s32 2, 1
      loop: start=0, step=1, limit=1
      $region430: #{tpu_custom_call.1} parent=428 // loop_pre_header
        _
      $region431: #{tpu_custom_call.1} parent=428 // loop_header
        %s558 = sphi 0, %s562
        %p559 = scmp.ge.s32.totalorder %s558, 1
        %s563 = sphi %s549, %s549
        %s564 = sphi %s550, %s550
      $region432: #{tpu_custom_call.1} parent=428 // loop_header_branch
        %561 = sbr.rel (%p559) target = $region436
      $region433: #{tpu_custom_call.1} parent=428 // loop_body
        %v565 = vld [vmem:[%s563] sm:%s556]
        %566 = vst [vmem:[%s564] sm:%s556] %v565
      $region434: #{tpu_custom_call.1} parent=428 // loop_footer
        %s562 = sadd.s32 1, %s558
      $region435: #{tpu_custom_call.1} parent=428 // loop_footer_branch
        %557 = sbr.rel target = $region431
      $region436: #{tpu_custom_call.1} parent=428 // loop_exit
        _
    $region429: #{tpu_custom_call.1} parent=1 // pred_fallthru
      _
    // Predicated region
    $region448: #{tpu_custom_call.1} parent=1 // pred_check
      _
    $region449: #{tpu_custom_call.1} parent=1 // pred_check_branch
      %583 = sbr.rel (0) target = $region451
    $region450: #{tpu_custom_call.1} parent=1 // pred_region
      %584 = vsyncadd [#allocation2], 16
    $region451: #{tpu_custom_call.1} parent=1 // pred_fallthru
      _
    %s585 = sadd.s32 %s16, 15
    %s586 = sld [smem:[#allocation4 + %s585]]
    %s587 = scalar_lea.vmem %s1, %s586
    %s588 = scalar_lea.vmem [#allocation5], 15
    // Predicated region
    $region452: #{tpu_custom_call.1} parent=1 // pred_check
      _
    $region453: #{tpu_custom_call.1} parent=1 // pred_check_branch
      %590 = sbr.rel target = $region455
    $region454: #{tpu_custom_call.1} parent=1 // pred_region
      // Predicated region
      $region467: #{tpu_custom_call.1} parent=454 // pred_check
        _
      $region468: #{tpu_custom_call.1} parent=454 // pred_check_branch
        %606 = sbr.rel (0) target = $region470
      $region469: #{tpu_custom_call.1} parent=454 // pred_region
        %s608 = ssub.s32 2, 1
        loop: start=0, step=1, limit=1
        $region471: #{tpu_custom_call.1} parent=469 // loop_pre_header
          _
        $region472: #{tpu_custom_call.1} parent=469 // loop_header
          %s610 = sphi 0, %s614
          %p611 = scmp.ge.s32.totalorder %s610, 1
          %s615 = sphi %s587, %s587
          %s616 = sphi %s588, %s588
        $region473: #{tpu_custom_call.1} parent=469 // loop_header_branch
          %613 = sbr.rel (%p611) target = $region477
        $region474: #{tpu_custom_call.1} parent=469 // loop_body
          %v617 = vld [vmem:[%s615] sm:%s608]
          %618 = vst [vmem:[%s616] sm:%s608] %v617
        $region475: #{tpu_custom_call.1} parent=469 // loop_footer
          %s614 = sadd.s32 1, %s610
        $region476: #{tpu_custom_call.1} parent=469 // loop_footer_branch
          %609 = sbr.rel target = $region472
        $region477: #{tpu_custom_call.1} parent=469 // loop_exit
          _
      $region470: #{tpu_custom_call.1} parent=454 // pred_fallthru
        _
    $region455: #{tpu_custom_call.1} parent=1 // pred_fallthru
      _
    // Predicated region
    $region456: #{tpu_custom_call.1} parent=1 // pred_check
      _
    $region457: #{tpu_custom_call.1} parent=1 // pred_check_branch
      %592 = sbr.rel (0) target = $region459
    $region458: #{tpu_custom_call.1} parent=1 // pred_region
      %s594 = ssub.s32 2, 1
      loop: start=0, step=1, limit=1
      $region460: #{tpu_custom_call.1} parent=458 // loop_pre_header
        _
      $region461: #{tpu_custom_call.1} parent=458 // loop_header
        %s596 = sphi 0, %s600
        %p597 = scmp.ge.s32.totalorder %s596, 1
        %s601 = sphi %s587, %s587
        %s602 = sphi %s588, %s588
      $region462: #{tpu_custom_call.1} parent=458 // loop_header_branch
        %599 = sbr.rel (%p597) target = $region466
      $region463: #{tpu_custom_call.1} parent=458 // loop_body
        %v603 = vld [vmem:[%s601] sm:%s594]
        %604 = vst [vmem:[%s602] sm:%s594] %v603
      $region464: #{tpu_custom_call.1} parent=458 // loop_footer
        %s600 = sadd.s32 1, %s596
      $region465: #{tpu_custom_call.1} parent=458 // loop_footer_branch
        %595 = sbr.rel target = $region461
      $region466: #{tpu_custom_call.1} parent=458 // loop_exit
        _
    $region459: #{tpu_custom_call.1} parent=1 // pred_fallthru
      _
    // Predicated region
    $region478: #{tpu_custom_call.1} parent=1 // pred_check
      _
    $region479: #{tpu_custom_call.1} parent=1 // pred_check_branch
      %621 = sbr.rel (0) target = $region481
    $region480: #{tpu_custom_call.1} parent=1 // pred_region
      %622 = vsyncadd [#allocation2], 16
    $region481: #{tpu_custom_call.1} parent=1 // pred_fallthru
      _
    %s623 = smul.u32 1, 1
    %s624 = sshll.u32 %s623, 4
    %625 = dma.done [#allocation2], %s624
    %s626 = sshll.u32 %s623, 4
    %627 = dma.done [#allocation2], %s626
    %s628 = sshll.u32 %s623, 4
    %629 = dma.done [#allocation2], %s628
    %s630 = sshll.u32 %s623, 4
    %631 = dma.done [#allocation2], %s630
    %s632 = sshll.u32 %s623, 4
    %633 = dma.done [#allocation2], %s632
    %s634 = sshll.u32 %s623, 4
    %635 = dma.done [#allocation2], %s634
    %s636 = sshll.u32 %s623, 4
    %637 = dma.done [#allocation2], %s636
    %s638 = sshll.u32 %s623, 4
    %639 = dma.done [#allocation2], %s638
    %s640 = sshll.u32 %s623, 4
    %641 = dma.done [#allocation2], %s640
    %s642 = sshll.u32 %s623, 4
    %643 = dma.done [#allocation2], %s642
    %s644 = sshll.u32 %s623, 4
    %645 = dma.done [#allocation2], %s644
    %s646 = sshll.u32 %s623, 4
    %647 = dma.done [#allocation2], %s646
    %s648 = sshll.u32 %s623, 4
    %649 = dma.done [#allocation2], %s648
    %s650 = sshll.u32 %s623, 4
    %651 = dma.done [#allocation2], %s650
    %s652 = sshll.u32 %s623, 4
    %653 = dma.done [#allocation2], %s652
    %s654 = sshll.u32 %s623, 4
    %655 = dma.done [#allocation2], %s654
    // Predicated region
    $region482: #{tpu_custom_call.1} parent=1 // pred_check
      _
    $region483: #{tpu_custom_call.1} parent=1 // pred_check_branch
      %657 = sbr.rel (0) target = $region485
    $region484: #{tpu_custom_call.1} parent=1 // pred_region
      %659 = vsyncadd [#allocation6], 0
      %s660 = sshll.u32 [#allocation5], 4
      %s661 = int_to_ptr.vmem [resolvable:$true] %s660
      %s662 = sshll.u32 %s2, 4
      %s663 = int_to_ptr.hbm [resolvable:$true] %s662
      %668 = dma.vmem_to_hbm [thread:$0]  %s661, 256, %s663, [#allocation6], 128, 128, 8
    $region485: #{tpu_custom_call.1} parent=1 // pred_fallthru
      _
    // Predicated region
    $region486: #{tpu_custom_call.1} parent=1 // pred_check
      _
    $region487: #{tpu_custom_call.1} parent=1 // pred_check_branch
      %670 = sbr.rel (0) target = $region489
    $region488: #{tpu_custom_call.1} parent=1 // pred_region
      %672 = dma.done [#allocation6], 256
    $region489: #{tpu_custom_call.1} parent=1 // pred_fallthru
      _
    %673 = vsyncpa [#allocation6], 1
  %674 = vsyncmov [#allocation2]
  %s675 = vpop.sfrf %674
  %p676 = scmp.eq.s32.totalorder %s675, 0
  %p677 = pneg %p676
  %679 = shalt.err (%p677)

</llo_original>
